<compile_context>
chip_gen: v7x
topology: tpu7x:2x2x1
jax: 0.10.0
libtpu: 0.0.40
codegen_flags: <defaults>
</compile_context>

<pallas_src>
import jax
import jax.numpy as jnp
import numpy as np
from jax.experimental import pallas as pl
from jax.experimental.pallas import tpu as pltpu


# ----------------------------------------------------------------------------
# Fully fused kernel: all LSTM layers + projection + log-softmax.
# ----------------------------------------------------------------------------
def make_fused_kernel(num_layers):
    def kernel(*refs):
        x_ref = refs[0]
        layer_refs = refs[1:1 + 3 * num_layers]
        wp_ref, bp_ref, out_ref = refs[1 + 3 * num_layers:]

        Tseq, N, E = x_ref.shape          # Tseq = LSTM seq len (= original batch B)
        V = wp_ref.shape[1]
        f32 = jnp.float32

        # Flatten (time, batch) rows once; second-minor dim is already a full
        # 8-sublane tile, so this reshape is a layout no-op.
        feat = x_ref[...].reshape(Tseq * N, E)

        for layer in range(num_layers):
            wih_ref = layer_refs[3 * layer + 0]   # (I, 4H)
            whh_ref = layer_refs[3 * layer + 1]   # (H, 4H)
            b_ref = layer_refs[3 * layer + 2]     # (1, 4H) = b_ih + b_hh (pre-summed)
            H = whh_ref.shape[0]

            # Hoisted input projection + bias: one matmul per layer, off the
            # serial recurrence path.
            xw = (jnp.dot(feat, wih_ref[...], preferred_element_type=f32)
                  + b_ref[...])                                  # (Tseq*N, 4H)
            whh = whh_ref[...]

            h = jnp.zeros((N, H), f32)
            c = jnp.zeros((N, H), f32)
            outs = []
            for t in range(Tseq):   # statically unrolled (Tseq is small & static)
                gates = xw[t * N:(t + 1) * N, :] + jnp.dot(
                    h, whh, preferred_element_type=f32)          # (N, 4H), [i,f,g,o]
                i_g = jax.nn.sigmoid(gates[:, 0 * H:1 * H])
                f_g = jax.nn.sigmoid(gates[:, 1 * H:2 * H])
                g_g = jnp.tanh(gates[:, 2 * H:3 * H])
                o_g = jax.nn.sigmoid(gates[:, 3 * H:4 * H])
                c = f_g * c + i_g * g_g
                h = o_g * jnp.tanh(c)
                outs.append(h)
            feat = jnp.concatenate(outs, axis=0)                 # (Tseq*N, H)
            # TODO(synk): nn.LSTM inter-layer dropout + nn.Dropout are
            # eval-mode identities here (stochastic masks not reproduced).

        # Final projection + numerically stable log-softmax over ALL rows at once.
        logits = (jnp.dot(feat, wp_ref[...], preferred_element_type=f32)
                  + bp_ref[...])                                 # (Tseq*N, V)
        m = jnp.max(logits, axis=-1, keepdims=True)
        lse = m + jnp.log(jnp.sum(jnp.exp(logits - m), axis=-1, keepdims=True))
        out_ref[...] = (logits - lse).reshape(Tseq, N, V)

    return kernel


def fused_forward(x, lstm_params, w_pred_t, b_pred):
    """x: (Tseq, N, E) time-major; returns (Tseq, N, V) time-major log-probs."""
    Tseq, N, E = x.shape
    V = w_pred_t.shape[1]
    num_layers = len(lstm_params)

    in_specs = [pl.BlockSpec((Tseq, N, E), lambda i: (0, 0, 0))]
    args = [x]
    for (wih_t, whh_t, b) in lstm_params:
        in_specs.append(pl.BlockSpec(wih_t.shape, lambda i: (0, 0)))
        in_specs.append(pl.BlockSpec(whh_t.shape, lambda i: (0, 0)))
        in_specs.append(pl.BlockSpec(b.shape, lambda i: (0, 0)))
        args += [wih_t, whh_t, b]
    in_specs.append(pl.BlockSpec(w_pred_t.shape, lambda i: (0, 0)))
    in_specs.append(pl.BlockSpec(b_pred.shape, lambda i: (0, 0)))
    args += [w_pred_t, b_pred]

    return pl.pallas_call(
        make_fused_kernel(num_layers),
        out_shape=jax.ShapeDtypeStruct((Tseq, N, V), jnp.float32),
        grid_spec=pltpu.PrefetchScalarGridSpec(
            num_scalar_prefetch=0,
            grid=(1,),
            in_specs=in_specs,
            out_specs=pl.BlockSpec((Tseq, N, V), lambda i: (0, 0, 0)),
        ),
        compiler_params=pltpu.CompilerParams(
            dimension_semantics=("arbitrary",)),
    )(*args)


# ----------------------------------------------------------------------------
# Full model forward (glue in plain JAX: embedding gather + output transpose).
# ----------------------------------------------------------------------------
def model_forward(inputs, params):
    # Embedding lookup (gather) - kept as a single XLA op, fused under jit.
    emb = jnp.take(params["embedding"], inputs, axis=0).astype(jnp.float32)  # (B, T, E)

    # PyTorch does emb.transpose(0,1) then a batch_first LSTM, which iterates
    # over the *original batch* axis.  Time-major for our kernel is therefore
    # exactly `emb` with shape (seq=B, lstm_batch=T, E).
    out_tm = fused_forward(emb, params["lstm"],
                           params["w_pred_t"], params["b_pred"])             # (B, T, V)

    # Match PyTorch output layout (num_steps, batch, vocab).  This is a tiny
    # (few KB) transpose left to XLA rather than an in-kernel major-dim relayout.
    return jnp.transpose(out_tm, (1, 0, 2))


# ----------------------------------------------------------------------------
# Pure-JAX reference (for correctness check against the Pallas kernel).
# ----------------------------------------------------------------------------
def model_forward_ref(inputs, params):
    emb = jnp.take(params["embedding"], inputs, axis=0).astype(jnp.float32)
    x = emb                                                    # (B, T, E)
    for (wih_t, whh_t, b) in params["lstm"]:
        Tm, N, _ = x.shape
        H = whh_t.shape[0]
        h = jnp.zeros((N, H), jnp.float32)
        c = jnp.zeros((N, H), jnp.float32)
        outs = []
        for t in range(Tm):
            gates = x[t] @ wih_t + h @ whh_t + b[0]
            i_g = jax.nn.sigmoid(gates[:, :H])
            f_g = jax.nn.sigmoid(gates[:, H:2 * H])
            g_g = jnp.tanh(gates[:, 2 * H:3 * H])
            o_g = jax.nn.sigmoid(gates[:, 3 * H:])
            c = f_g * c + i_g * g_g
            h = o_g * jnp.tanh(c)
            outs.append(h)
        x = jnp.stack(outs, axis=0)
    logits = x @ params["w_pred_t"] + params["b_pred"][0]
    out = jax.nn.log_softmax(logits, axis=-1)
    return jnp.transpose(out, (1, 0, 2))


# ----------------------------------------------------------------------------
# Deterministic parameter construction (PyTorch-like init, synthetic).
# ----------------------------------------------------------------------------
def make_params(key, vocab_size, embedding_size, hidden_size, num_layers):
    keys = jax.random.split(key, 1 + 4 * num_layers + 2)
    k_iter = iter(keys)

    params = {}
    params["embedding"] = jax.random.normal(
        next(k_iter), (vocab_size, embedding_size), jnp.float32)

    bound = 1.0 / np.sqrt(hidden_size)
    lstm_params = []
    for layer in range(num_layers):
        in_size = embedding_size if layer == 0 else hidden_size
        w_ih = jax.random.uniform(next(k_iter), (4 * hidden_size, in_size),
                                  jnp.float32, -bound, bound)
        w_hh = jax.random.uniform(next(k_iter), (4 * hidden_size, hidden_size),
                                  jnp.float32, -bound, bound)
        b_ih = jax.random.uniform(next(k_iter), (1, 4 * hidden_size),
                                  jnp.float32, -bound, bound)
        b_hh = jax.random.uniform(next(k_iter), (1, 4 * hidden_size),
                                  jnp.float32, -bound, bound)
        # Pre-transpose weights for (x @ W.T) done as (x @ w_t) and pre-sum biases.
        lstm_params.append((w_ih.T, w_hh.T, b_ih + b_hh))
    params["lstm"] = lstm_params

    w_pred = jax.random.uniform(next(k_iter), (vocab_size, hidden_size),
                                jnp.float32, -bound, bound)
    b_pred = jax.random.uniform(next(k_iter), (1, vocab_size),
                                jnp.float32, -bound, bound)
    params["w_pred_t"] = w_pred.T
    params["b_pred"] = b_pred
    return params


if __name__ == "__main__":
    # Small config consistent with the module's __init__.
    vocab_size = 64
    embedding_size = 16
    hidden_size = 32
    num_layers = 2
    num_steps = 8
    batch = 4

    key = jax.random.PRNGKey(0)
    k_param, k_inp = jax.random.split(key)
    params = make_params(k_param, vocab_size, embedding_size,
                         hidden_size, num_layers)

    inputs = jax.random.randint(k_inp, (batch, num_steps), 0, vocab_size,
                                dtype=jnp.int32)

    fwd = jax.jit(model_forward)
    out = jax.block_until_ready(fwd(inputs, params))
    ref = jax.block_until_ready(model_forward_ref(inputs, params))

    assert out.shape == (num_steps, batch, vocab_size), out.shape
    np.testing.assert_allclose(np.asarray(out), np.asarray(ref),
                               rtol=1e-4, atol=1e-4)
    print("KERNEL_OK")
</pallas_src>

<mosaic_0001>
module attributes {stable_mosaic.version = 11 : i64} {
  func.func @kernel(%arg0: i32, %arg1: memref<4x8x16xf32, #tpu.memory_space<vmem>>, %arg2: memref<16x128xf32, #tpu.memory_space<vmem>>, %arg3: memref<32x128xf32, #tpu.memory_space<vmem>>, %arg4: memref<1x128xf32, #tpu.memory_space<vmem>>, %arg5: memref<32x128xf32, #tpu.memory_space<vmem>>, %arg6: memref<32x128xf32, #tpu.memory_space<vmem>>, %arg7: memref<1x128xf32, #tpu.memory_space<vmem>>, %arg8: memref<32x64xf32, #tpu.memory_space<vmem>>, %arg9: memref<1x64xf32, #tpu.memory_space<vmem>>, %arg10: memref<4x8x64xf32, #tpu.memory_space<vmem>>) attributes {dimension_semantics = [#tpu.dimension_semantics<arbitrary>], iteration_bounds = array<i64: 1>, scalar_prefetch = 0 : i64, scratch_operands = 0 : i64, tpu.core_type = #tpu.core_type<tc>, window_params = [{pipeline_mode = #tpu.pipeline_mode<synchronous>, transform_indices = @transform_0, window_bounds = array<i64: 4, 8, 16>}, {pipeline_mode = #tpu.pipeline_mode<synchronous>, transform_indices = @transform_1, window_bounds = array<i64: 16, 128>}, {pipeline_mode = #tpu.pipeline_mode<synchronous>, transform_indices = @transform_2, window_bounds = array<i64: 32, 128>}, {pipeline_mode = #tpu.pipeline_mode<synchronous>, transform_indices = @transform_3, window_bounds = array<i64: 1, 128>}, {pipeline_mode = #tpu.pipeline_mode<synchronous>, transform_indices = @transform_4, window_bounds = array<i64: 32, 128>}, {pipeline_mode = #tpu.pipeline_mode<synchronous>, transform_indices = @transform_5, window_bounds = array<i64: 32, 128>}, {pipeline_mode = #tpu.pipeline_mode<synchronous>, transform_indices = @transform_6, window_bounds = array<i64: 1, 128>}, {pipeline_mode = #tpu.pipeline_mode<synchronous>, transform_indices = @transform_7, window_bounds = array<i64: 32, 64>}, {pipeline_mode = #tpu.pipeline_mode<synchronous>, transform_indices = @transform_8, window_bounds = array<i64: 1, 64>}, {pipeline_mode = #tpu.pipeline_mode<synchronous>, transform_indices = @transform_9, window_bounds = array<i64: 4, 8, 64>}]} {
    %c0 = arith.constant 0 : index
    %c0_0 = arith.constant 0 : index
    %c0_1 = arith.constant 0 : index
    %0 = vector.load %arg1[%c0, %c0_0, %c0_1] : memref<4x8x16xf32, #tpu.memory_space<vmem>>, vector<4x8x16xf32>
    %1 = vector.shape_cast %0 : vector<4x8x16xf32> to vector<32x16xf32>
    %c0_2 = arith.constant 0 : index
    %c0_3 = arith.constant 0 : index
    %2 = vector.load %arg2[%c0_2, %c0_3] : memref<16x128xf32, #tpu.memory_space<vmem>>, vector<16x128xf32>
    %cst = arith.constant dense<0.000000e+00> : vector<32x128xf32>
    %3 = tpu.matmul %1, %2, %cst {dimension_numbers = #tpu.dot_dimension_numbers<[1], [0], [0], [1], [0, 0, 1, 1], [], []>} : vector<32x16xf32>, vector<16x128xf32>, vector<32x128xf32> -> vector<32x128xf32>
    %c0_4 = arith.constant 0 : index
    %c0_5 = arith.constant 0 : index
    %4 = vector.load %arg4[%c0_4, %c0_5] : memref<1x128xf32, #tpu.memory_space<vmem>>, vector<1x128xf32>
    %5 = vector.broadcast %4 : vector<1x128xf32> to vector<32x128xf32>
    %6 = arith.addf %3, %5 : vector<32x128xf32>
    %c0_6 = arith.constant 0 : index
    %c0_7 = arith.constant 0 : index
    %7 = vector.load %arg3[%c0_6, %c0_7] : memref<32x128xf32, #tpu.memory_space<vmem>>, vector<32x128xf32>
    %cst_8 = arith.constant 0.000000e+00 : f32
    %8 = vector.broadcast %cst_8 : f32 to vector<8x32xf32>
    %cst_9 = arith.constant 0.000000e+00 : f32
    %9 = vector.broadcast %cst_9 : f32 to vector<8x32xf32>
    %10 = vector.extract_strided_slice %6 {offsets = [0, 0], sizes = [8, 128], strides = [1, 1]} : vector<32x128xf32> to vector<8x128xf32>
    %cst_10 = arith.constant dense<0.000000e+00> : vector<8x128xf32>
    %11 = tpu.matmul %8, %7, %cst_10 {dimension_numbers = #tpu.dot_dimension_numbers<[1], [0], [0], [1], [0, 0, 1, 1], [], []>} : vector<8x32xf32>, vector<32x128xf32>, vector<8x128xf32> -> vector<8x128xf32>
    %12 = arith.addf %10, %11 : vector<8x128xf32>
    %13 = vector.extract_strided_slice %12 {offsets = [0, 0], sizes = [8, 32], strides = [1, 1]} : vector<8x128xf32> to vector<8x32xf32>
    %14 = arith.negf %13 : vector<8x32xf32>
    %15 = math.exp %14 : vector<8x32xf32>
    %cst_11 = arith.constant 1.000000e+00 : f32
    %16 = vector.broadcast %cst_11 : f32 to vector<8x32xf32>
    %17 = arith.addf %16, %15 : vector<8x32xf32>
    %18 = arith.divf %16, %17 : vector<8x32xf32>
    %19 = vector.extract_strided_slice %12 {offsets = [0, 32], sizes = [8, 32], strides = [1, 1]} : vector<8x128xf32> to vector<8x32xf32>
    %20 = arith.negf %19 : vector<8x32xf32>
    %21 = math.exp %20 : vector<8x32xf32>
    %cst_12 = arith.constant 1.000000e+00 : f32
    %22 = vector.broadcast %cst_12 : f32 to vector<8x32xf32>
    %23 = arith.addf %22, %21 : vector<8x32xf32>
    %24 = arith.divf %22, %23 : vector<8x32xf32>
    %25 = vector.extract_strided_slice %12 {offsets = [0, 64], sizes = [8, 32], strides = [1, 1]} : vector<8x128xf32> to vector<8x32xf32>
    %26 = math.tanh %25 : vector<8x32xf32>
    %27 = vector.extract_strided_slice %12 {offsets = [0, 96], sizes = [8, 32], strides = [1, 1]} : vector<8x128xf32> to vector<8x32xf32>
    %28 = arith.negf %27 : vector<8x32xf32>
    %29 = math.exp %28 : vector<8x32xf32>
    %cst_13 = arith.constant 1.000000e+00 : f32
    %30 = vector.broadcast %cst_13 : f32 to vector<8x32xf32>
    %31 = arith.addf %30, %29 : vector<8x32xf32>
    %32 = arith.divf %30, %31 : vector<8x32xf32>
    %33 = arith.mulf %24, %9 : vector<8x32xf32>
    %34 = arith.mulf %18, %26 : vector<8x32xf32>
    %35 = arith.addf %33, %34 : vector<8x32xf32>
    %36 = math.tanh %35 : vector<8x32xf32>
    %37 = arith.mulf %32, %36 : vector<8x32xf32>
    %38 = vector.extract_strided_slice %6 {offsets = [8, 0], sizes = [8, 128], strides = [1, 1]} : vector<32x128xf32> to vector<8x128xf32>
    %cst_14 = arith.constant dense<0.000000e+00> : vector<8x128xf32>
    %39 = tpu.matmul %37, %7, %cst_14 {dimension_numbers = #tpu.dot_dimension_numbers<[1], [0], [0], [1], [0, 0, 1, 1], [], []>} : vector<8x32xf32>, vector<32x128xf32>, vector<8x128xf32> -> vector<8x128xf32>
    %40 = arith.addf %38, %39 : vector<8x128xf32>
    %41 = vector.extract_strided_slice %40 {offsets = [0, 0], sizes = [8, 32], strides = [1, 1]} : vector<8x128xf32> to vector<8x32xf32>
    %42 = arith.negf %41 : vector<8x32xf32>
    %43 = math.exp %42 : vector<8x32xf32>
    %cst_15 = arith.constant 1.000000e+00 : f32
    %44 = vector.broadcast %cst_15 : f32 to vector<8x32xf32>
    %45 = arith.addf %44, %43 : vector<8x32xf32>
    %46 = arith.divf %44, %45 : vector<8x32xf32>
    %47 = vector.extract_strided_slice %40 {offsets = [0, 32], sizes = [8, 32], strides = [1, 1]} : vector<8x128xf32> to vector<8x32xf32>
    %48 = arith.negf %47 : vector<8x32xf32>
    %49 = math.exp %48 : vector<8x32xf32>
    %cst_16 = arith.constant 1.000000e+00 : f32
    %50 = vector.broadcast %cst_16 : f32 to vector<8x32xf32>
    %51 = arith.addf %50, %49 : vector<8x32xf32>
    %52 = arith.divf %50, %51 : vector<8x32xf32>
    %53 = vector.extract_strided_slice %40 {offsets = [0, 64], sizes = [8, 32], strides = [1, 1]} : vector<8x128xf32> to vector<8x32xf32>
    %54 = math.tanh %53 : vector<8x32xf32>
    %55 = vector.extract_strided_slice %40 {offsets = [0, 96], sizes = [8, 32], strides = [1, 1]} : vector<8x128xf32> to vector<8x32xf32>
    %56 = arith.negf %55 : vector<8x32xf32>
    %57 = math.exp %56 : vector<8x32xf32>
    %cst_17 = arith.constant 1.000000e+00 : f32
    %58 = vector.broadcast %cst_17 : f32 to vector<8x32xf32>
    %59 = arith.addf %58, %57 : vector<8x32xf32>
    %60 = arith.divf %58, %59 : vector<8x32xf32>
    %61 = arith.mulf %52, %35 : vector<8x32xf32>
    %62 = arith.mulf %46, %54 : vector<8x32xf32>
    %63 = arith.addf %61, %62 : vector<8x32xf32>
    %64 = math.tanh %63 : vector<8x32xf32>
    %65 = arith.mulf %60, %64 : vector<8x32xf32>
    %66 = vector.extract_strided_slice %6 {offsets = [16, 0], sizes = [8, 128], strides = [1, 1]} : vector<32x128xf32> to vector<8x128xf32>
    %cst_18 = arith.constant dense<0.000000e+00> : vector<8x128xf32>
    %67 = tpu.matmul %65, %7, %cst_18 {dimension_numbers = #tpu.dot_dimension_numbers<[1], [0], [0], [1], [0, 0, 1, 1], [], []>} : vector<8x32xf32>, vector<32x128xf32>, vector<8x128xf32> -> vector<8x128xf32>
    %68 = arith.addf %66, %67 : vector<8x128xf32>
    %69 = vector.extract_strided_slice %68 {offsets = [0, 0], sizes = [8, 32], strides = [1, 1]} : vector<8x128xf32> to vector<8x32xf32>
    %70 = arith.negf %69 : vector<8x32xf32>
    %71 = math.exp %70 : vector<8x32xf32>
    %cst_19 = arith.constant 1.000000e+00 : f32
    %72 = vector.broadcast %cst_19 : f32 to vector<8x32xf32>
    %73 = arith.addf %72, %71 : vector<8x32xf32>
    %74 = arith.divf %72, %73 : vector<8x32xf32>
    %75 = vector.extract_strided_slice %68 {offsets = [0, 32], sizes = [8, 32], strides = [1, 1]} : vector<8x128xf32> to vector<8x32xf32>
    %76 = arith.negf %75 : vector<8x32xf32>
    %77 = math.exp %76 : vector<8x32xf32>
    %cst_20 = arith.constant 1.000000e+00 : f32
    %78 = vector.broadcast %cst_20 : f32 to vector<8x32xf32>
    %79 = arith.addf %78, %77 : vector<8x32xf32>
    %80 = arith.divf %78, %79 : vector<8x32xf32>
    %81 = vector.extract_strided_slice %68 {offsets = [0, 64], sizes = [8, 32], strides = [1, 1]} : vector<8x128xf32> to vector<8x32xf32>
    %82 = math.tanh %81 : vector<8x32xf32>
    %83 = vector.extract_strided_slice %68 {offsets = [0, 96], sizes = [8, 32], strides = [1, 1]} : vector<8x128xf32> to vector<8x32xf32>
    %84 = arith.negf %83 : vector<8x32xf32>
    %85 = math.exp %84 : vector<8x32xf32>
    %cst_21 = arith.constant 1.000000e+00 : f32
    %86 = vector.broadcast %cst_21 : f32 to vector<8x32xf32>
    %87 = arith.addf %86, %85 : vector<8x32xf32>
    %88 = arith.divf %86, %87 : vector<8x32xf32>
    %89 = arith.mulf %80, %63 : vector<8x32xf32>
    %90 = arith.mulf %74, %82 : vector<8x32xf32>
    %91 = arith.addf %89, %90 : vector<8x32xf32>
    %92 = math.tanh %91 : vector<8x32xf32>
    %93 = arith.mulf %88, %92 : vector<8x32xf32>
    %94 = vector.extract_strided_slice %6 {offsets = [24, 0], sizes = [8, 128], strides = [1, 1]} : vector<32x128xf32> to vector<8x128xf32>
    %cst_22 = arith.constant dense<0.000000e+00> : vector<8x128xf32>
    %95 = tpu.matmul %93, %7, %cst_22 {dimension_numbers = #tpu.dot_dimension_numbers<[1], [0], [0], [1], [0, 0, 1, 1], [], []>} : vector<8x32xf32>, vector<32x128xf32>, vector<8x128xf32> -> vector<8x128xf32>
    %96 = arith.addf %94, %95 : vector<8x128xf32>
    %97 = vector.extract_strided_slice %96 {offsets = [0, 0], sizes = [8, 32], strides = [1, 1]} : vector<8x128xf32> to vector<8x32xf32>
    %98 = arith.negf %97 : vector<8x32xf32>
    %99 = math.exp %98 : vector<8x32xf32>
    %cst_23 = arith.constant 1.000000e+00 : f32
    %100 = vector.broadcast %cst_23 : f32 to vector<8x32xf32>
    %101 = arith.addf %100, %99 : vector<8x32xf32>
    %102 = arith.divf %100, %101 : vector<8x32xf32>
    %103 = vector.extract_strided_slice %96 {offsets = [0, 32], sizes = [8, 32], strides = [1, 1]} : vector<8x128xf32> to vector<8x32xf32>
    %104 = arith.negf %103 : vector<8x32xf32>
    %105 = math.exp %104 : vector<8x32xf32>
    %cst_24 = arith.constant 1.000000e+00 : f32
    %106 = vector.broadcast %cst_24 : f32 to vector<8x32xf32>
    %107 = arith.addf %106, %105 : vector<8x32xf32>
    %108 = arith.divf %106, %107 : vector<8x32xf32>
    %109 = vector.extract_strided_slice %96 {offsets = [0, 64], sizes = [8, 32], strides = [1, 1]} : vector<8x128xf32> to vector<8x32xf32>
    %110 = math.tanh %109 : vector<8x32xf32>
    %111 = vector.extract_strided_slice %96 {offsets = [0, 96], sizes = [8, 32], strides = [1, 1]} : vector<8x128xf32> to vector<8x32xf32>
    %112 = arith.negf %111 : vector<8x32xf32>
    %113 = math.exp %112 : vector<8x32xf32>
    %cst_25 = arith.constant 1.000000e+00 : f32
    %114 = vector.broadcast %cst_25 : f32 to vector<8x32xf32>
    %115 = arith.addf %114, %113 : vector<8x32xf32>
    %116 = arith.divf %114, %115 : vector<8x32xf32>
    %117 = arith.mulf %108, %91 : vector<8x32xf32>
    %118 = arith.mulf %102, %110 : vector<8x32xf32>
    %119 = arith.addf %117, %118 : vector<8x32xf32>
    %120 = math.tanh %119 : vector<8x32xf32>
    %121 = arith.mulf %116, %120 : vector<8x32xf32>
    %122 = tpu.concatenate %37, %65, %93, %121 in 0 : vector<8x32xf32>, vector<8x32xf32>, vector<8x32xf32>, vector<8x32xf32> -> vector<32x32xf32>
    %c0_26 = arith.constant 0 : index
    %c0_27 = arith.constant 0 : index
    %123 = vector.load %arg5[%c0_26, %c0_27] : memref<32x128xf32, #tpu.memory_space<vmem>>, vector<32x128xf32>
    %cst_28 = arith.constant dense<0.000000e+00> : vector<32x128xf32>
    %124 = tpu.matmul %122, %123, %cst_28 {dimension_numbers = #tpu.dot_dimension_numbers<[1], [0], [0], [1], [0, 0, 1, 1], [], []>} : vector<32x32xf32>, vector<32x128xf32>, vector<32x128xf32> -> vector<32x128xf32>
    %c0_29 = arith.constant 0 : index
    %c0_30 = arith.constant 0 : index
    %125 = vector.load %arg7[%c0_29, %c0_30] : memref<1x128xf32, #tpu.memory_space<vmem>>, vector<1x128xf32>
    %126 = vector.broadcast %125 : vector<1x128xf32> to vector<32x128xf32>
    %127 = arith.addf %124, %126 : vector<32x128xf32>
    %c0_31 = arith.constant 0 : index
    %c0_32 = arith.constant 0 : index
    %128 = vector.load %arg6[%c0_31, %c0_32] : memref<32x128xf32, #tpu.memory_space<vmem>>, vector<32x128xf32>
    %cst_33 = arith.constant 0.000000e+00 : f32
    %129 = vector.broadcast %cst_33 : f32 to vector<8x32xf32>
    %cst_34 = arith.constant 0.000000e+00 : f32
    %130 = vector.broadcast %cst_34 : f32 to vector<8x32xf32>
    %131 = vector.extract_strided_slice %127 {offsets = [0, 0], sizes = [8, 128], strides = [1, 1]} : vector<32x128xf32> to vector<8x128xf32>
    %cst_35 = arith.constant dense<0.000000e+00> : vector<8x128xf32>
    %132 = tpu.matmul %129, %128, %cst_35 {dimension_numbers = #tpu.dot_dimension_numbers<[1], [0], [0], [1], [0, 0, 1, 1], [], []>} : vector<8x32xf32>, vector<32x128xf32>, vector<8x128xf32> -> vector<8x128xf32>
    %133 = arith.addf %131, %132 : vector<8x128xf32>
    %134 = vector.extract_strided_slice %133 {offsets = [0, 0], sizes = [8, 32], strides = [1, 1]} : vector<8x128xf32> to vector<8x32xf32>
    %135 = arith.negf %134 : vector<8x32xf32>
    %136 = math.exp %135 : vector<8x32xf32>
    %cst_36 = arith.constant 1.000000e+00 : f32
    %137 = vector.broadcast %cst_36 : f32 to vector<8x32xf32>
    %138 = arith.addf %137, %136 : vector<8x32xf32>
    %139 = arith.divf %137, %138 : vector<8x32xf32>
    %140 = vector.extract_strided_slice %133 {offsets = [0, 32], sizes = [8, 32], strides = [1, 1]} : vector<8x128xf32> to vector<8x32xf32>
    %141 = arith.negf %140 : vector<8x32xf32>
    %142 = math.exp %141 : vector<8x32xf32>
    %cst_37 = arith.constant 1.000000e+00 : f32
    %143 = vector.broadcast %cst_37 : f32 to vector<8x32xf32>
    %144 = arith.addf %143, %142 : vector<8x32xf32>
    %145 = arith.divf %143, %144 : vector<8x32xf32>
    %146 = vector.extract_strided_slice %133 {offsets = [0, 64], sizes = [8, 32], strides = [1, 1]} : vector<8x128xf32> to vector<8x32xf32>
    %147 = math.tanh %146 : vector<8x32xf32>
    %148 = vector.extract_strided_slice %133 {offsets = [0, 96], sizes = [8, 32], strides = [1, 1]} : vector<8x128xf32> to vector<8x32xf32>
    %149 = arith.negf %148 : vector<8x32xf32>
    %150 = math.exp %149 : vector<8x32xf32>
    %cst_38 = arith.constant 1.000000e+00 : f32
    %151 = vector.broadcast %cst_38 : f32 to vector<8x32xf32>
    %152 = arith.addf %151, %150 : vector<8x32xf32>
    %153 = arith.divf %151, %152 : vector<8x32xf32>
    %154 = arith.mulf %145, %130 : vector<8x32xf32>
    %155 = arith.mulf %139, %147 : vector<8x32xf32>
    %156 = arith.addf %154, %155 : vector<8x32xf32>
    %157 = math.tanh %156 : vector<8x32xf32>
    %158 = arith.mulf %153, %157 : vector<8x32xf32>
    %159 = vector.extract_strided_slice %127 {offsets = [8, 0], sizes = [8, 128], strides = [1, 1]} : vector<32x128xf32> to vector<8x128xf32>
    %cst_39 = arith.constant dense<0.000000e+00> : vector<8x128xf32>
    %160 = tpu.matmul %158, %128, %cst_39 {dimension_numbers = #tpu.dot_dimension_numbers<[1], [0], [0], [1], [0, 0, 1, 1], [], []>} : vector<8x32xf32>, vector<32x128xf32>, vector<8x128xf32> -> vector<8x128xf32>
    %161 = arith.addf %159, %160 : vector<8x128xf32>
    %162 = vector.extract_strided_slice %161 {offsets = [0, 0], sizes = [8, 32], strides = [1, 1]} : vector<8x128xf32> to vector<8x32xf32>
    %163 = arith.negf %162 : vector<8x32xf32>
    %164 = math.exp %163 : vector<8x32xf32>
    %cst_40 = arith.constant 1.000000e+00 : f32
    %165 = vector.broadcast %cst_40 : f32 to vector<8x32xf32>
    %166 = arith.addf %165, %164 : vector<8x32xf32>
    %167 = arith.divf %165, %166 : vector<8x32xf32>
    %168 = vector.extract_strided_slice %161 {offsets = [0, 32], sizes = [8, 32], strides = [1, 1]} : vector<8x128xf32> to vector<8x32xf32>
    %169 = arith.negf %168 : vector<8x32xf32>
    %170 = math.exp %169 : vector<8x32xf32>
    %cst_41 = arith.constant 1.000000e+00 : f32
    %171 = vector.broadcast %cst_41 : f32 to vector<8x32xf32>
    %172 = arith.addf %171, %170 : vector<8x32xf32>
    %173 = arith.divf %171, %172 : vector<8x32xf32>
    %174 = vector.extract_strided_slice %161 {offsets = [0, 64], sizes = [8, 32], strides = [1, 1]} : vector<8x128xf32> to vector<8x32xf32>
    %175 = math.tanh %174 : vector<8x32xf32>
    %176 = vector.extract_strided_slice %161 {offsets = [0, 96], sizes = [8, 32], strides = [1, 1]} : vector<8x128xf32> to vector<8x32xf32>
    %177 = arith.negf %176 : vector<8x32xf32>
    %178 = math.exp %177 : vector<8x32xf32>
    %cst_42 = arith.constant 1.000000e+00 : f32
    %179 = vector.broadcast %cst_42 : f32 to vector<8x32xf32>
    %180 = arith.addf %179, %178 : vector<8x32xf32>
    %181 = arith.divf %179, %180 : vector<8x32xf32>
    %182 = arith.mulf %173, %156 : vector<8x32xf32>
    %183 = arith.mulf %167, %175 : vector<8x32xf32>
    %184 = arith.addf %182, %183 : vector<8x32xf32>
    %185 = math.tanh %184 : vector<8x32xf32>
    %186 = arith.mulf %181, %185 : vector<8x32xf32>
    %187 = vector.extract_strided_slice %127 {offsets = [16, 0], sizes = [8, 128], strides = [1, 1]} : vector<32x128xf32> to vector<8x128xf32>
    %cst_43 = arith.constant dense<0.000000e+00> : vector<8x128xf32>
    %188 = tpu.matmul %186, %128, %cst_43 {dimension_numbers = #tpu.dot_dimension_numbers<[1], [0], [0], [1], [0, 0, 1, 1], [], []>} : vector<8x32xf32>, vector<32x128xf32>, vector<8x128xf32> -> vector<8x128xf32>
    %189 = arith.addf %187, %188 : vector<8x128xf32>
    %190 = vector.extract_strided_slice %189 {offsets = [0, 0], sizes = [8, 32], strides = [1, 1]} : vector<8x128xf32> to vector<8x32xf32>
    %191 = arith.negf %190 : vector<8x32xf32>
    %192 = math.exp %191 : vector<8x32xf32>
    %cst_44 = arith.constant 1.000000e+00 : f32
    %193 = vector.broadcast %cst_44 : f32 to vector<8x32xf32>
    %194 = arith.addf %193, %192 : vector<8x32xf32>
    %195 = arith.divf %193, %194 : vector<8x32xf32>
    %196 = vector.extract_strided_slice %189 {offsets = [0, 32], sizes = [8, 32], strides = [1, 1]} : vector<8x128xf32> to vector<8x32xf32>
    %197 = arith.negf %196 : vector<8x32xf32>
    %198 = math.exp %197 : vector<8x32xf32>
    %cst_45 = arith.constant 1.000000e+00 : f32
    %199 = vector.broadcast %cst_45 : f32 to vector<8x32xf32>
    %200 = arith.addf %199, %198 : vector<8x32xf32>
    %201 = arith.divf %199, %200 : vector<8x32xf32>
    %202 = vector.extract_strided_slice %189 {offsets = [0, 64], sizes = [8, 32], strides = [1, 1]} : vector<8x128xf32> to vector<8x32xf32>
    %203 = math.tanh %202 : vector<8x32xf32>
    %204 = vector.extract_strided_slice %189 {offsets = [0, 96], sizes = [8, 32], strides = [1, 1]} : vector<8x128xf32> to vector<8x32xf32>
    %205 = arith.negf %204 : vector<8x32xf32>
    %206 = math.exp %205 : vector<8x32xf32>
    %cst_46 = arith.constant 1.000000e+00 : f32
    %207 = vector.broadcast %cst_46 : f32 to vector<8x32xf32>
    %208 = arith.addf %207, %206 : vector<8x32xf32>
    %209 = arith.divf %207, %208 : vector<8x32xf32>
    %210 = arith.mulf %201, %184 : vector<8x32xf32>
    %211 = arith.mulf %195, %203 : vector<8x32xf32>
    %212 = arith.addf %210, %211 : vector<8x32xf32>
    %213 = math.tanh %212 : vector<8x32xf32>
    %214 = arith.mulf %209, %213 : vector<8x32xf32>
    %215 = vector.extract_strided_slice %127 {offsets = [24, 0], sizes = [8, 128], strides = [1, 1]} : vector<32x128xf32> to vector<8x128xf32>
    %cst_47 = arith.constant dense<0.000000e+00> : vector<8x128xf32>
    %216 = tpu.matmul %214, %128, %cst_47 {dimension_numbers = #tpu.dot_dimension_numbers<[1], [0], [0], [1], [0, 0, 1, 1], [], []>} : vector<8x32xf32>, vector<32x128xf32>, vector<8x128xf32> -> vector<8x128xf32>
    %217 = arith.addf %215, %216 : vector<8x128xf32>
    %218 = vector.extract_strided_slice %217 {offsets = [0, 0], sizes = [8, 32], strides = [1, 1]} : vector<8x128xf32> to vector<8x32xf32>
    %219 = arith.negf %218 : vector<8x32xf32>
    %220 = math.exp %219 : vector<8x32xf32>
    %cst_48 = arith.constant 1.000000e+00 : f32
    %221 = vector.broadcast %cst_48 : f32 to vector<8x32xf32>
    %222 = arith.addf %221, %220 : vector<8x32xf32>
    %223 = arith.divf %221, %222 : vector<8x32xf32>
    %224 = vector.extract_strided_slice %217 {offsets = [0, 32], sizes = [8, 32], strides = [1, 1]} : vector<8x128xf32> to vector<8x32xf32>
    %225 = arith.negf %224 : vector<8x32xf32>
    %226 = math.exp %225 : vector<8x32xf32>
    %cst_49 = arith.constant 1.000000e+00 : f32
    %227 = vector.broadcast %cst_49 : f32 to vector<8x32xf32>
    %228 = arith.addf %227, %226 : vector<8x32xf32>
    %229 = arith.divf %227, %228 : vector<8x32xf32>
    %230 = vector.extract_strided_slice %217 {offsets = [0, 64], sizes = [8, 32], strides = [1, 1]} : vector<8x128xf32> to vector<8x32xf32>
    %231 = math.tanh %230 : vector<8x32xf32>
    %232 = vector.extract_strided_slice %217 {offsets = [0, 96], sizes = [8, 32], strides = [1, 1]} : vector<8x128xf32> to vector<8x32xf32>
    %233 = arith.negf %232 : vector<8x32xf32>
    %234 = math.exp %233 : vector<8x32xf32>
    %cst_50 = arith.constant 1.000000e+00 : f32
    %235 = vector.broadcast %cst_50 : f32 to vector<8x32xf32>
    %236 = arith.addf %235, %234 : vector<8x32xf32>
    %237 = arith.divf %235, %236 : vector<8x32xf32>
    %238 = arith.mulf %229, %212 : vector<8x32xf32>
    %239 = arith.mulf %223, %231 : vector<8x32xf32>
    %240 = arith.addf %238, %239 : vector<8x32xf32>
    %241 = math.tanh %240 : vector<8x32xf32>
    %242 = arith.mulf %237, %241 : vector<8x32xf32>
    %243 = tpu.concatenate %158, %186, %214, %242 in 0 : vector<8x32xf32>, vector<8x32xf32>, vector<8x32xf32>, vector<8x32xf32> -> vector<32x32xf32>
    %c0_51 = arith.constant 0 : index
    %c0_52 = arith.constant 0 : index
    %244 = vector.load %arg8[%c0_51, %c0_52] : memref<32x64xf32, #tpu.memory_space<vmem>>, vector<32x64xf32>
    %cst_53 = arith.constant dense<0.000000e+00> : vector<32x64xf32>
    %245 = tpu.matmul %243, %244, %cst_53 {dimension_numbers = #tpu.dot_dimension_numbers<[1], [0], [0], [1], [0, 0, 1, 1], [], []>} : vector<32x32xf32>, vector<32x64xf32>, vector<32x64xf32> -> vector<32x64xf32>
    %c0_54 = arith.constant 0 : index
    %c0_55 = arith.constant 0 : index
    %246 = vector.load %arg9[%c0_54, %c0_55] : memref<1x64xf32, #tpu.memory_space<vmem>>, vector<1x64xf32>
    %247 = vector.broadcast %246 : vector<1x64xf32> to vector<32x64xf32>
    %248 = arith.addf %245, %247 : vector<32x64xf32>
    %cst_56 = arith.constant dense<0xFF800000> : vector<32xf32>
    %249 = vector.multi_reduction <maximumf>, %248, %cst_56 [1] : vector<32x64xf32> to vector<32xf32>
    %250 = vector.shape_cast %249 : vector<32xf32> to vector<32x1xf32>
    %251 = vector.broadcast %250 : vector<32x1xf32> to vector<32x64xf32>
    %252 = arith.subf %248, %251 : vector<32x64xf32>
    %253 = math.exp %252 : vector<32x64xf32>
    %cst_57 = arith.constant dense<0.000000e+00> : vector<32xf32>
    %254 = vector.multi_reduction <add>, %253, %cst_57 [1] : vector<32x64xf32> to vector<32xf32>
    %255 = vector.shape_cast %254 : vector<32xf32> to vector<32x1xf32>
    %256 = math.log %255 : vector<32x1xf32>
    %257 = arith.addf %250, %256 : vector<32x1xf32>
    %258 = vector.broadcast %257 : vector<32x1xf32> to vector<32x64xf32>
    %259 = arith.subf %248, %258 : vector<32x64xf32>
    %260 = vector.shape_cast %259 : vector<32x64xf32> to vector<4x8x64xf32>
    %c0_58 = arith.constant 0 : index
    %c0_59 = arith.constant 0 : index
    %c0_60 = arith.constant 0 : index
    %261 = vector.load %arg10[%c0_58, %c0_59, %c0_60] : memref<4x8x64xf32, #tpu.memory_space<vmem>>, vector<4x8x64xf32>
    tpu.vector_store %arg10[%c0_58, %c0_59, %c0_60], %260 {strides = array<i32>} : memref<4x8x64xf32, #tpu.memory_space<vmem>>, vector<4x8x64xf32>,
    return
  }
  func.func @transform_0(%arg0: i32) -> (i32, i32, i32) {
    %c0_i32 = arith.constant 0 : i32
    %c0_i32_0 = arith.constant 0 : i32
    %c0_i32_1 = arith.constant 0 : i32
    %c0_i32_2 = arith.constant 0 : i32
    return %c0_i32, %c0_i32_0, %c0_i32_1 : i32, i32, i32
  }
  func.func @transform_1(%arg0: i32) -> (i32, i32) {
    %c0_i32 = arith.constant 0 : i32
    %c0_i32_0 = arith.constant 0 : i32
    %c0_i32_1 = arith.constant 0 : i32
    return %c0_i32, %c0_i32_0 : i32, i32
  }
  func.func @transform_2(%arg0: i32) -> (i32, i32) {
    %c0_i32 = arith.constant 0 : i32
    %c0_i32_0 = arith.constant 0 : i32
    %c0_i32_1 = arith.constant 0 : i32
    return %c0_i32, %c0_i32_0 : i32, i32
  }
  func.func @transform_3(%arg0: i32) -> (i32, i32) {
    %c0_i32 = arith.constant 0 : i32
    %c0_i32_0 = arith.constant 0 : i32
    %c0_i32_1 = arith.constant 0 : i32
    return %c0_i32, %c0_i32_0 : i32, i32
  }
  func.func @transform_4(%arg0: i32) -> (i32, i32) {
    %c0_i32 = arith.constant 0 : i32
    %c0_i32_0 = arith.constant 0 : i32
    %c0_i32_1 = arith.constant 0 : i32
    return %c0_i32, %c0_i32_0 : i32, i32
  }
  func.func @transform_5(%arg0: i32) -> (i32, i32) {
    %c0_i32 = arith.constant 0 : i32
    %c0_i32_0 = arith.constant 0 : i32
    %c0_i32_1 = arith.constant 0 : i32
    return %c0_i32, %c0_i32_0 : i32, i32
  }
  func.func @transform_6(%arg0: i32) -> (i32, i32) {
    %c0_i32 = arith.constant 0 : i32
    %c0_i32_0 = arith.constant 0 : i32
    %c0_i32_1 = arith.constant 0 : i32
    return %c0_i32, %c0_i32_0 : i32, i32
  }
  func.func @transform_7(%arg0: i32) -> (i32, i32) {
    %c0_i32 = arith.constant 0 : i32
    %c0_i32_0 = arith.constant 0 : i32
    %c0_i32_1 = arith.constant 0 : i32
    return %c0_i32, %c0_i32_0 : i32, i32
  }
  func.func @transform_8(%arg0: i32) -> (i32, i32) {
    %c0_i32 = arith.constant 0 : i32
    %c0_i32_0 = arith.constant 0 : i32
    %c0_i32_1 = arith.constant 0 : i32
    return %c0_i32, %c0_i32_0 : i32, i32
  }
  func.func @transform_9(%arg0: i32) -> (i32, i32, i32) {
    %c0_i32 = arith.constant 0 : i32
    %c0_i32_0 = arith.constant 0 : i32
    %c0_i32_1 = arith.constant 0 : i32
    %c0_i32_2 = arith.constant 0 : i32
    return %c0_i32, %c0_i32_0, %c0_i32_1 : i32, i32, i32
  }
}

</mosaic_0001>

<llo_original>
// kernel: model_forward.1
$region0: #{model_forward.1}
  #allocation0 [shape = 'u32[]', space=smem, size = 0x4, offset = 0x4, fixed_abs, tag = 'smem constant byte address 0x4 - core index']
  #allocation1 [shape = 'u32[144,128]{1,0:T(1,128)}', space=vmem, size = 0x12000, scoped, tag = 'internal scratch']
  %s0 = inlined_call_operand.vmem [shape: f32[4,8,16], index: 0, kind: input, shape index: {}]
  %s1 = inlined_call_operand.vmem [shape: f32[16,128], index: 1, kind: input, shape index: {}]
  %s2 = inlined_call_operand.vmem [shape: f32[32,128], index: 2, kind: input, shape index: {}]
  %s3 = inlined_call_operand.vmem [shape: f32[1,128], index: 3, kind: input, shape index: {}]
  %s4 = inlined_call_operand.vmem [shape: f32[32,128], index: 4, kind: input, shape index: {}]
  %s5 = inlined_call_operand.vmem [shape: f32[32,128], index: 5, kind: input, shape index: {}]
  %s6 = inlined_call_operand.vmem [shape: f32[1,128], index: 6, kind: input, shape index: {}]
  %s7 = inlined_call_operand.vmem [shape: f32[32,64], index: 7, kind: input, shape index: {}]
  %s8 = inlined_call_operand.vmem [shape: f32[1,64], index: 8, kind: input, shape index: {}]
  %s9 = inlined_call_operand.vmem [shape: f32[4,8,64], index: 9, kind: output, shape index: {}]
  %s10 = sld [smem:[#allocation0]]
  $region46: #{model_forward.1} parent=0
    _
  %s12 = ssub.s32 1, %s10
  %s13 = scalar_select 0, %s12, %s10
  // Predicated region
  $region2: #{model_forward.1} parent=0 // pred_check
    _
  $region3: #{model_forward.1} parent=0 // pred_check_branch
    %15 = sbr.rel (0) target = $region5
  $region4: #{model_forward.1} parent=0 // pred_region
    _
  $region5: #{model_forward.1} parent=0 // pred_fallthru
    _
  // Predicated region
  $region6: #{model_forward.1} parent=0 // pred_check
    _
  $region7: #{model_forward.1} parent=0 // pred_check_branch
    %17 = sbr.rel (0) target = $region9
  $region8: #{model_forward.1} parent=0 // pred_region
    _
  $region9: #{model_forward.1} parent=0 // pred_fallthru
    _
  // Predicated region
  $region10: #{model_forward.1} parent=0 // pred_check
    _
  $region11: #{model_forward.1} parent=0 // pred_check_branch
    %19 = sbr.rel (0) target = $region13
  $region12: #{model_forward.1} parent=0 // pred_region
    _
  $region13: #{model_forward.1} parent=0 // pred_fallthru
    _
  // Predicated region
  $region14: #{model_forward.1} parent=0 // pred_check
    _
  $region15: #{model_forward.1} parent=0 // pred_check_branch
    %21 = sbr.rel (0) target = $region17
  $region16: #{model_forward.1} parent=0 // pred_region
    _
  $region17: #{model_forward.1} parent=0 // pred_fallthru
    _
  // Predicated region
  $region18: #{model_forward.1} parent=0 // pred_check
    _
  $region19: #{model_forward.1} parent=0 // pred_check_branch
    %23 = sbr.rel (0) target = $region21
  $region20: #{model_forward.1} parent=0 // pred_region
    _
  $region21: #{model_forward.1} parent=0 // pred_fallthru
    _
  // Predicated region
  $region22: #{model_forward.1} parent=0 // pred_check
    _
  $region23: #{model_forward.1} parent=0 // pred_check_branch
    %25 = sbr.rel (0) target = $region25
  $region24: #{model_forward.1} parent=0 // pred_region
    _
  $region25: #{model_forward.1} parent=0 // pred_fallthru
    _
  // Predicated region
  $region26: #{model_forward.1} parent=0 // pred_check
    _
  $region27: #{model_forward.1} parent=0 // pred_check_branch
    %27 = sbr.rel (0) target = $region29
  $region28: #{model_forward.1} parent=0 // pred_region
    _
  $region29: #{model_forward.1} parent=0 // pred_fallthru
    _
  // Predicated region
  $region30: #{model_forward.1} parent=0 // pred_check
    _
  $region31: #{model_forward.1} parent=0 // pred_check_branch
    %29 = sbr.rel (0) target = $region33
  $region32: #{model_forward.1} parent=0 // pred_region
    _
  $region33: #{model_forward.1} parent=0 // pred_fallthru
    _
  // Predicated region
  $region34: #{model_forward.1} parent=0 // pred_check
    _
  $region35: #{model_forward.1} parent=0 // pred_check_branch
    %31 = sbr.rel (0) target = $region37
  $region36: #{model_forward.1} parent=0 // pred_region
    _
  $region37: #{model_forward.1} parent=0 // pred_fallthru
    _
  %v32 = vld [vmem:[%s0] sm:$0xff]
  %v33 = vld [vmem:[%s0 + $0x8] sm:$0xff]
  %v34 = vld [vmem:[%s0 + $0x10] sm:$0xff]
  %v35 = vld [vmem:[%s0 + $0x18] sm:$0xff]
  %v36 = vld [vmem:[%s1] sm:$0xff]
  %v37 = vld [vmem:[%s1 + $0x8] sm:$0xff]
  %v38 = vld [vmem:[%s3] sm:$0x1]
  %v40 = vlaneseq
  %v41 = vshrl.u32 %v40, 7
  %v42 = vsub.s32 0, %v41
  %v43 = vrot.slane %v38, %v42
  %vm45 = vcmask 130048
  %v47 = vsel %vm45, %v32, 0
  %v50 = vsel %vm45, %v33, 0
  %v53 = vsel %vm45, %v34, 0
  %v56 = vsel %vm45, %v35, 0
  %58 = vmatprep.subr.mxu0 0.0
  %59 = vmatpush1.msra.mxu0 %v36
  %60 = vmatprep.subr.mxu0 0.0
  %61 = vmatpush1.msra.mxu0 %v37
  %62 = vmatprep.subr.mxu0 0.0
  %63 = vmatpush1.msra.mxu0 0.0
  %64 = vmatprep.subr.mxu0 0.0
  %65 = vmatpush1.msra.mxu0 0.0
  %66 = vmatprep.subr.mxu0 0.0
  %67 = vmatpush1.msra.mxu0 0.0
  %68 = vmatprep.subr.mxu0 0.0
  %69 = vmatpush1.msra.mxu0 0.0
  %70 = vmatprep.subr.mxu0 0.0
  %71 = vmatpush1.msra.mxu0 0.0
  %72 = vmatprep.subr.mxu0 0.0
  %73 = vmatpush1.msra.mxu0 0.0
  %74 = vmatprep.subr.mxu0 0.0
  %75 = vmatpush1.msra.mxu0 0.0
  %76 = vmatprep.subr.mxu0 0.0
  %77 = vmatpush1.msra.mxu0 0.0
  %78 = vmatprep.subr.mxu0 0.0
  %79 = vmatpush1.msra.mxu0 0.0
  %80 = vmatprep.subr.mxu0 0.0
  %81 = vmatpush1.msra.mxu0 0.0
  %82 = vmatprep.subr.mxu0 0.0
  %83 = vmatpush1.msra.mxu0 0.0
  %84 = vmatprep.subr.mxu0 0.0
  %85 = vmatpush1.msra.mxu0 0.0
  %86 = vmatprep.subr.mxu0 0.0
  %87 = vmatpush1.msra.mxu0 0.0
  %88 = vmatprep.subr.mxu0 0.0
  %89 = vmatpush1.msra.mxu0 0.0
  %90 = vmatprep.subr.mxu0 0.0
  %91 = vmatpush1.msra.mxu0 0.0
  %92 = vmatprep.subr.mxu0 0.0
  %93 = vmatpush1.msra.mxu0 0.0
  %94 = vmatprep.subr.mxu0 0.0
  %95 = vmatpush1.msra.mxu0 0.0
  %96 = vmatprep.subr.mxu0 0.0
  %97 = vmatpush1.msra.mxu0 0.0
  %98 = vmatprep.subr.mxu0 0.0
  %99 = vmatpush1.msra.mxu0 0.0
  %100 = vmatprep.subr.mxu0 0.0
  %101 = vmatpush1.msra.mxu0 0.0
  %102 = vmatprep.subr.mxu0 0.0
  %103 = vmatpush1.msra.mxu0 0.0
  %104 = vmatprep.subr.mxu0 0.0
  %105 = vmatpush1.msra.mxu0 0.0
  %106 = vmatprep.subr.mxu0 0.0
  %107 = vmatpush1.msra.mxu0 0.0
  %108 = vmatprep.subr.mxu0 0.0
  %109 = vmatpush1.msra.mxu0 0.0
  %110 = vmatprep.subr.mxu0 0.0
  %111 = vmatpush1.msra.mxu0 0.0
  %112 = vmatprep.subr.mxu0 0.0
  %113 = vmatpush1.msra.mxu0 0.0
  %114 = vmatprep.subr.mxu0 0.0
  %115 = vmatpush1.msra.mxu0 0.0
  %116 = vmatprep.subr.mxu0 0.0
  %117 = vmatpush1.msra.mxu0 0.0
  %118 = vmatprep.subr.mxu0 0.0
  %119 = vmatpush1.msra.mxu0 0.0
  %120 = vmatprep.subr.mxu0 0.0
  %121 = vmatpush1.msra.mxu0 0.0
  %122 = vmatprep.mubr.f32.mxu0 0.0
  %123 = vmatmul.mubr.f32.gmra.mrb[0].mxu0 %v47
  %v124 = vpop.f32.mrb[0].mxu0
  %v125 = vadd.f32 %v43, %v124
  %v126 = vpop.f32.mrb[0].mxu0
  %127 = vmatprep.mubr.f32.mxu0 0.0
  %128 = vmatmul.mubr.f32.gmra.mrb[0].mxu0 %v50
  %v129 = vpop.f32.mrb[0].mxu0
  %v130 = vadd.f32 %v43, %v129
  %v131 = vpop.f32.mrb[0].mxu0
  %132 = vmatprep.mubr.f32.mxu0 0.0
  %133 = vmatmul.mubr.f32.gmra.mrb[0].mxu0 %v53
  %v134 = vpop.f32.mrb[0].mxu0
  %v135 = vadd.f32 %v43, %v134
  %v136 = vpop.f32.mrb[0].mxu0
  %137 = vmatprep.mubr.f32.mxu0 0.0
  %138 = vmatmul.mubr.f32.gmra.mrb[0].mxu0 %v56
  %v139 = vpop.f32.mrb[0].mxu0
  %v140 = vadd.f32 %v43, %v139
  %v141 = vpop.f32.mrb[0].mxu0
  %142 = vdwg.mxu0
  %v143 = vld [vmem:[%s2] sm:$0xff]
  %v144 = vld [vmem:[%s2 + $0x8] sm:$0xff]
  %v145 = vld [vmem:[%s2 + $0x10] sm:$0xff]
  %v146 = vld [vmem:[%s2 + $0x18] sm:$0xff]
  %vm147 = vcmask 261120
  %v149 = vsel %vm147, 0.0, 0
  %151 = vmatprep.subr.mxu0 0.0
  %152 = vmatpush1.msra.mxu0 %v143
  %153 = vmatprep.subr.mxu0 0.0
  %154 = vmatpush1.msra.mxu0 %v144
  %155 = vmatprep.subr.mxu0 0.0
  %156 = vmatpush1.msra.mxu0 %v145
  %157 = vmatprep.subr.mxu0 0.0
  %158 = vmatpush1.msra.mxu0 %v146
  %159 = vmatprep.subr.mxu0 0.0
  %160 = vmatpush1.msra.mxu0 0.0
  %161 = vmatprep.subr.mxu0 0.0
  %162 = vmatpush1.msra.mxu0 0.0
  %163 = vmatprep.subr.mxu0 0.0
  %164 = vmatpush1.msra.mxu0 0.0
  %165 = vmatprep.subr.mxu0 0.0
  %166 = vmatpush1.msra.mxu0 0.0
  %167 = vmatprep.subr.mxu0 0.0
  %168 = vmatpush1.msra.mxu0 0.0
  %169 = vmatprep.subr.mxu0 0.0
  %170 = vmatpush1.msra.mxu0 0.0
  %171 = vmatprep.subr.mxu0 0.0
  %172 = vmatpush1.msra.mxu0 0.0
  %173 = vmatprep.subr.mxu0 0.0
  %174 = vmatpush1.msra.mxu0 0.0
  %175 = vmatprep.subr.mxu0 0.0
  %176 = vmatpush1.msra.mxu0 0.0
  %177 = vmatprep.subr.mxu0 0.0
  %178 = vmatpush1.msra.mxu0 0.0
  %179 = vmatprep.subr.mxu0 0.0
  %180 = vmatpush1.msra.mxu0 0.0
  %181 = vmatprep.subr.mxu0 0.0
  %182 = vmatpush1.msra.mxu0 0.0
  %183 = vmatprep.subr.mxu0 0.0
  %184 = vmatpush1.msra.mxu0 0.0
  %185 = vmatprep.subr.mxu0 0.0
  %186 = vmatpush1.msra.mxu0 0.0
  %187 = vmatprep.subr.mxu0 0.0
  %188 = vmatpush1.msra.mxu0 0.0
  %189 = vmatprep.subr.mxu0 0.0
  %190 = vmatpush1.msra.mxu0 0.0
  %191 = vmatprep.subr.mxu0 0.0
  %192 = vmatpush1.msra.mxu0 0.0
  %193 = vmatprep.subr.mxu0 0.0
  %194 = vmatpush1.msra.mxu0 0.0
  %195 = vmatprep.subr.mxu0 0.0
  %196 = vmatpush1.msra.mxu0 0.0
  %197 = vmatprep.subr.mxu0 0.0
  %198 = vmatpush1.msra.mxu0 0.0
  %199 = vmatprep.subr.mxu0 0.0
  %200 = vmatpush1.msra.mxu0 0.0
  %201 = vmatprep.subr.mxu0 0.0
  %202 = vmatpush1.msra.mxu0 0.0
  %203 = vmatprep.subr.mxu0 0.0
  %204 = vmatpush1.msra.mxu0 0.0
  %205 = vmatprep.subr.mxu0 0.0
  %206 = vmatpush1.msra.mxu0 0.0
  %207 = vmatprep.subr.mxu0 0.0
  %208 = vmatpush1.msra.mxu0 0.0
  %209 = vmatprep.subr.mxu0 0.0
  %210 = vmatpush1.msra.mxu0 0.0
  %211 = vmatprep.subr.mxu0 0.0
  %212 = vmatpush1.msra.mxu0 0.0
  %213 = vmatprep.subr.mxu0 0.0
  %214 = vmatpush1.msra.mxu0 0.0
  %215 = vmatprep.mubr.f32.mxu0 0.0
  %216 = vmatmul.mubr.f32.gmra.mrb[0].mxu0 %v149
  %v217 = vpop.f32.mrb[0].mxu0
  %v218 = vadd.f32 0.0, %v217
  %v219 = vpop.f32.mrb[0].mxu0
  %220 = vdwg.mxu0
  %v221 = vadd.f32 %v125, %v218
  %v222 = vxor.u32 %v221, 2147483648
  %v223 = vmul.f32 %v222, 1.442695
  %v224 = vpow.pop %v223
  %v225 = vadd.f32 %v224, 1.0
  %v226 = vrcp.pop %v225
  %v227 = vmul.f32 1.0, %v226
  %v228 = vtanh.pop %v221
  %v229 = vmul.f32 %v227, 0.0
  %231 = vrot.lane.b32.xlu0 %v228, 64
  %v232 = vpop.permute.xlu0 %231
  %v234 = vmul.f32 %v227, %v232
  %236 = vrot.lane.b32.xlu0 %v234, 32
  %v237 = vpop.permute.xlu0 %236
  %v239 = vadd.f32 %v229, %v237
  %v240 = vtanh.pop %v239
  %242 = vrot.lane.b32.xlu0 %v240, 64
  %v243 = vpop.permute.xlu0 %242
  %v245 = vmul.f32 %v227, %v243
  %247 = vrot.lane.b32.xlu0 %v245, 32
  %v248 = vpop.permute.xlu0 %247
  %v249 = vsel %vm147, %v248, 0
  %251 = vmatprep.subr.mxu0 0.0
  %252 = vmatpush1.msra.mxu0 %v143
  %253 = vmatprep.subr.mxu0 0.0
  %254 = vmatpush1.msra.mxu0 %v144
  %255 = vmatprep.subr.mxu0 0.0
  %256 = vmatpush1.msra.mxu0 %v145
  %257 = vmatprep.subr.mxu0 0.0
  %258 = vmatpush1.msra.mxu0 %v146
  %259 = vmatprep.subr.mxu0 0.0
  %260 = vmatpush1.msra.mxu0 0.0
  %261 = vmatprep.subr.mxu0 0.0
  %262 = vmatpush1.msra.mxu0 0.0
  %263 = vmatprep.subr.mxu0 0.0
  %264 = vmatpush1.msra.mxu0 0.0
  %265 = vmatprep.subr.mxu0 0.0
  %266 = vmatpush1.msra.mxu0 0.0
  %267 = vmatprep.subr.mxu0 0.0
  %268 = vmatpush1.msra.mxu0 0.0
  %269 = vmatprep.subr.mxu0 0.0
  %270 = vmatpush1.msra.mxu0 0.0
  %271 = vmatprep.subr.mxu0 0.0
  %272 = vmatpush1.msra.mxu0 0.0
  %273 = vmatprep.subr.mxu0 0.0
  %274 = vmatpush1.msra.mxu0 0.0
  %275 = vmatprep.subr.mxu0 0.0
  %276 = vmatpush1.msra.mxu0 0.0
  %277 = vmatprep.subr.mxu0 0.0
  %278 = vmatpush1.msra.mxu0 0.0
  %279 = vmatprep.subr.mxu0 0.0
  %280 = vmatpush1.msra.mxu0 0.0
  %281 = vmatprep.subr.mxu0 0.0
  %282 = vmatpush1.msra.mxu0 0.0
  %283 = vmatprep.subr.mxu0 0.0
  %284 = vmatpush1.msra.mxu0 0.0
  %285 = vmatprep.subr.mxu0 0.0
  %286 = vmatpush1.msra.mxu0 0.0
  %287 = vmatprep.subr.mxu0 0.0
  %288 = vmatpush1.msra.mxu0 0.0
  %289 = vmatprep.subr.mxu0 0.0
  %290 = vmatpush1.msra.mxu0 0.0
  %291 = vmatprep.subr.mxu0 0.0
  %292 = vmatpush1.msra.mxu0 0.0
  %293 = vmatprep.subr.mxu0 0.0
  %294 = vmatpush1.msra.mxu0 0.0
  %295 = vmatprep.subr.mxu0 0.0
  %296 = vmatpush1.msra.mxu0 0.0
  %297 = vmatprep.subr.mxu0 0.0
  %298 = vmatpush1.msra.mxu0 0.0
  %299 = vmatprep.subr.mxu0 0.0
  %300 = vmatpush1.msra.mxu0 0.0
  %301 = vmatprep.subr.mxu0 0.0
  %302 = vmatpush1.msra.mxu0 0.0
  %303 = vmatprep.subr.mxu0 0.0
  %304 = vmatpush1.msra.mxu0 0.0
  %305 = vmatprep.subr.mxu0 0.0
  %306 = vmatpush1.msra.mxu0 0.0
  %307 = vmatprep.subr.mxu0 0.0
  %308 = vmatpush1.msra.mxu0 0.0
  %309 = vmatprep.subr.mxu0 0.0
  %310 = vmatpush1.msra.mxu0 0.0
  %311 = vmatprep.subr.mxu0 0.0
  %312 = vmatpush1.msra.mxu0 0.0
  %313 = vmatprep.subr.mxu0 0.0
  %314 = vmatpush1.msra.mxu0 0.0
  %315 = vmatprep.mubr.f32.mxu0 0.0
  %316 = vmatmul.mubr.f32.gmra.mrb[0].mxu0 %v249
  %v317 = vpop.f32.mrb[0].mxu0
  %v318 = vadd.f32 0.0, %v317
  %v319 = vpop.f32.mrb[0].mxu0
  %320 = vdwg.mxu0
  %v321 = vadd.f32 %v130, %v318
  %v322 = vxor.u32 %v321, 2147483648
  %v323 = vmul.f32 %v322, 1.442695
  %v324 = vpow.pop %v323
  %v325 = vadd.f32 %v324, 1.0
  %v326 = vrcp.pop %v325
  %v327 = vmul.f32 1.0, %v326
  %v328 = vtanh.pop %v321
  %v329 = vmul.f32 %v327, %v239
  %331 = vrot.lane.b32.xlu0 %v328, 64
  %v332 = vpop.permute.xlu0 %331
  %v334 = vmul.f32 %v327, %v332
  %336 = vrot.lane.b32.xlu0 %v334, 32
  %v337 = vpop.permute.xlu0 %336
  %v339 = vadd.f32 %v329, %v337
  %v340 = vtanh.pop %v339
  %342 = vrot.lane.b32.xlu0 %v340, 64
  %v343 = vpop.permute.xlu0 %342
  %v345 = vmul.f32 %v327, %v343
  %347 = vrot.lane.b32.xlu0 %v345, 32
  %v348 = vpop.permute.xlu0 %347
  %v349 = vsel %vm147, %v348, 0
  %351 = vmatprep.subr.mxu0 0.0
  %352 = vmatpush1.msra.mxu0 %v143
  %353 = vmatprep.subr.mxu0 0.0
  %354 = vmatpush1.msra.mxu0 %v144
  %355 = vmatprep.subr.mxu0 0.0
  %356 = vmatpush1.msra.mxu0 %v145
  %357 = vmatprep.subr.mxu0 0.0
  %358 = vmatpush1.msra.mxu0 %v146
  %359 = vmatprep.subr.mxu0 0.0
  %360 = vmatpush1.msra.mxu0 0.0
  %361 = vmatprep.subr.mxu0 0.0
  %362 = vmatpush1.msra.mxu0 0.0
  %363 = vmatprep.subr.mxu0 0.0
  %364 = vmatpush1.msra.mxu0 0.0
  %365 = vmatprep.subr.mxu0 0.0
  %366 = vmatpush1.msra.mxu0 0.0
  %367 = vmatprep.subr.mxu0 0.0
  %368 = vmatpush1.msra.mxu0 0.0
  %369 = vmatprep.subr.mxu0 0.0
  %370 = vmatpush1.msra.mxu0 0.0
  %371 = vmatprep.subr.mxu0 0.0
  %372 = vmatpush1.msra.mxu0 0.0
  %373 = vmatprep.subr.mxu0 0.0
  %374 = vmatpush1.msra.mxu0 0.0
  %375 = vmatprep.subr.mxu0 0.0
  %376 = vmatpush1.msra.mxu0 0.0
  %377 = vmatprep.subr.mxu0 0.0
  %378 = vmatpush1.msra.mxu0 0.0
  %379 = vmatprep.subr.mxu0 0.0
  %380 = vmatpush1.msra.mxu0 0.0
  %381 = vmatprep.subr.mxu0 0.0
  %382 = vmatpush1.msra.mxu0 0.0
  %383 = vmatprep.subr.mxu0 0.0
  %384 = vmatpush1.msra.mxu0 0.0
  %385 = vmatprep.subr.mxu0 0.0
  %386 = vmatpush1.msra.mxu0 0.0
  %387 = vmatprep.subr.mxu0 0.0
  %388 = vmatpush1.msra.mxu0 0.0
  %389 = vmatprep.subr.mxu0 0.0
  %390 = vmatpush1.msra.mxu0 0.0
  %391 = vmatprep.subr.mxu0 0.0
  %392 = vmatpush1.msra.mxu0 0.0
  %393 = vmatprep.subr.mxu0 0.0
  %394 = vmatpush1.msra.mxu0 0.0
  %395 = vmatprep.subr.mxu0 0.0
  %396 = vmatpush1.msra.mxu0 0.0
  %397 = vmatprep.subr.mxu0 0.0
  %398 = vmatpush1.msra.mxu0 0.0
  %399 = vmatprep.subr.mxu0 0.0
  %400 = vmatpush1.msra.mxu0 0.0
  %401 = vmatprep.subr.mxu0 0.0
  %402 = vmatpush1.msra.mxu0 0.0
  %403 = vmatprep.subr.mxu0 0.0
  %404 = vmatpush1.msra.mxu0 0.0
  %405 = vmatprep.subr.mxu0 0.0
  %406 = vmatpush1.msra.mxu0 0.0
  %407 = vmatprep.subr.mxu0 0.0
  %408 = vmatpush1.msra.mxu0 0.0
  %409 = vmatprep.subr.mxu0 0.0
  %410 = vmatpush1.msra.mxu0 0.0
  %411 = vmatprep.subr.mxu0 0.0
  %412 = vmatpush1.msra.mxu0 0.0
  %413 = vmatprep.subr.mxu0 0.0
  %414 = vmatpush1.msra.mxu0 0.0
  %415 = vmatprep.mubr.f32.mxu0 0.0
  %416 = vmatmul.mubr.f32.gmra.mrb[0].mxu0 %v349
  %v417 = vpop.f32.mrb[0].mxu0
  %v418 = vadd.f32 0.0, %v417
  %v419 = vpop.f32.mrb[0].mxu0
  %420 = vdwg.mxu0
  %v421 = vadd.f32 %v135, %v418
  %v422 = vxor.u32 %v421, 2147483648
  %v423 = vmul.f32 %v422, 1.442695
  %v424 = vpow.pop %v423
  %v425 = vadd.f32 %v424, 1.0
  %v426 = vrcp.pop %v425
  %v427 = vmul.f32 1.0, %v426
  %v428 = vtanh.pop %v421
  %v429 = vmul.f32 %v427, %v339
  %431 = vrot.lane.b32.xlu0 %v428, 64
  %v432 = vpop.permute.xlu0 %431
  %v434 = vmul.f32 %v427, %v432
  %436 = vrot.lane.b32.xlu0 %v434, 32
  %v437 = vpop.permute.xlu0 %436
  %v439 = vadd.f32 %v429, %v437
  %v440 = vtanh.pop %v439
  %442 = vrot.lane.b32.xlu0 %v440, 64
  %v443 = vpop.permute.xlu0 %442
  %v445 = vmul.f32 %v427, %v443
  %447 = vrot.lane.b32.xlu0 %v445, 32
  %v448 = vpop.permute.xlu0 %447
  %v449 = vsel %vm147, %v448, 0
  %451 = vmatprep.subr.mxu0 0.0
  %452 = vmatpush1.msra.mxu0 %v143
  %453 = vmatprep.subr.mxu0 0.0
  %454 = vmatpush1.msra.mxu0 %v144
  %455 = vmatprep.subr.mxu0 0.0
  %456 = vmatpush1.msra.mxu0 %v145
  %457 = vmatprep.subr.mxu0 0.0
  %458 = vmatpush1.msra.mxu0 %v146
  %459 = vmatprep.subr.mxu0 0.0
  %460 = vmatpush1.msra.mxu0 0.0
  %461 = vmatprep.subr.mxu0 0.0
  %462 = vmatpush1.msra.mxu0 0.0
  %463 = vmatprep.subr.mxu0 0.0
  %464 = vmatpush1.msra.mxu0 0.0
  %465 = vmatprep.subr.mxu0 0.0
  %466 = vmatpush1.msra.mxu0 0.0
  %467 = vmatprep.subr.mxu0 0.0
  %468 = vmatpush1.msra.mxu0 0.0
  %469 = vmatprep.subr.mxu0 0.0
  %470 = vmatpush1.msra.mxu0 0.0
  %471 = vmatprep.subr.mxu0 0.0
  %472 = vmatpush1.msra.mxu0 0.0
  %473 = vmatprep.subr.mxu0 0.0
  %474 = vmatpush1.msra.mxu0 0.0
  %475 = vmatprep.subr.mxu0 0.0
  %476 = vmatpush1.msra.mxu0 0.0
  %477 = vmatprep.subr.mxu0 0.0
  %478 = vmatpush1.msra.mxu0 0.0
  %479 = vmatprep.subr.mxu0 0.0
  %480 = vmatpush1.msra.mxu0 0.0
  %481 = vmatprep.subr.mxu0 0.0
  %482 = vmatpush1.msra.mxu0 0.0
  %483 = vmatprep.subr.mxu0 0.0
  %484 = vmatpush1.msra.mxu0 0.0
  %485 = vmatprep.subr.mxu0 0.0
  %486 = vmatpush1.msra.mxu0 0.0
  %487 = vmatprep.subr.mxu0 0.0
  %488 = vmatpush1.msra.mxu0 0.0
  %489 = vmatprep.subr.mxu0 0.0
  %490 = vmatpush1.msra.mxu0 0.0
  %491 = vmatprep.subr.mxu0 0.0
  %492 = vmatpush1.msra.mxu0 0.0
  %493 = vmatprep.subr.mxu0 0.0
  %494 = vmatpush1.msra.mxu0 0.0
  %495 = vmatprep.subr.mxu0 0.0
  %496 = vmatpush1.msra.mxu0 0.0
  %497 = vmatprep.subr.mxu0 0.0
  %498 = vmatpush1.msra.mxu0 0.0
  %499 = vmatprep.subr.mxu0 0.0
  %500 = vmatpush1.msra.mxu0 0.0
  %501 = vmatprep.subr.mxu0 0.0
  %502 = vmatpush1.msra.mxu0 0.0
  %503 = vmatprep.subr.mxu0 0.0
  %504 = vmatpush1.msra.mxu0 0.0
  %505 = vmatprep.subr.mxu0 0.0
  %506 = vmatpush1.msra.mxu0 0.0
  %507 = vmatprep.subr.mxu0 0.0
  %508 = vmatpush1.msra.mxu0 0.0
  %509 = vmatprep.subr.mxu0 0.0
  %510 = vmatpush1.msra.mxu0 0.0
  %511 = vmatprep.subr.mxu0 0.0
  %512 = vmatpush1.msra.mxu0 0.0
  %513 = vmatprep.subr.mxu0 0.0
  %514 = vmatpush1.msra.mxu0 0.0
  %515 = vmatprep.mubr.f32.mxu0 0.0
  %516 = vmatmul.mubr.f32.gmra.mrb[0].mxu0 %v449
  %v517 = vpop.f32.mrb[0].mxu0
  %v518 = vadd.f32 0.0, %v517
  %v519 = vpop.f32.mrb[0].mxu0
  %520 = vdwg.mxu0
  %v521 = vadd.f32 %v140, %v518
  %v522 = vxor.u32 %v521, 2147483648
  %v523 = vmul.f32 %v522, 1.442695
  %v524 = vpow.pop %v523
  %v525 = vadd.f32 %v524, 1.0
  %v526 = vrcp.pop %v525
  %v527 = vmul.f32 1.0, %v526
  %v528 = vtanh.pop %v521
  %v529 = vmul.f32 %v527, %v439
  %531 = vrot.lane.b32.xlu0 %v528, 64
  %v532 = vpop.permute.xlu0 %531
  %v534 = vmul.f32 %v527, %v532
  %536 = vrot.lane.b32.xlu0 %v534, 32
  %v537 = vpop.permute.xlu0 %536
  %v539 = vadd.f32 %v529, %v537
  %v540 = vtanh.pop %v539
  %542 = vrot.lane.b32.xlu0 %v540, 64
  %v543 = vpop.permute.xlu0 %542
  %v545 = vmul.f32 %v527, %v543
  %v546 = vld [vmem:[%s4] sm:$0xff]
  %v547 = vld [vmem:[%s4 + $0x8] sm:$0xff]
  %v548 = vld [vmem:[%s4 + $0x10] sm:$0xff]
  %v549 = vld [vmem:[%s4 + $0x18] sm:$0xff]
  %v550 = vld [vmem:[%s6] sm:$0x1]
  %v552 = vlaneseq
  %v553 = vshrl.u32 %v552, 7
  %v554 = vsub.s32 0, %v553
  %v555 = vrot.slane %v550, %v554
  %558 = vrot.lane.b32.xlu0 %v545, 32
  %v559 = vpop.permute.xlu0 %558
  %v560 = vsel %vm147, %v559, 0
  %562 = vmatprep.subr.mxu0 0.0
  %563 = vmatpush1.msra.mxu0 %v546
  %564 = vmatprep.subr.mxu0 0.0
  %565 = vmatpush1.msra.mxu0 %v547
  %566 = vmatprep.subr.mxu0 0.0
  %567 = vmatpush1.msra.mxu0 %v548
  %568 = vmatprep.subr.mxu0 0.0
  %569 = vmatpush1.msra.mxu0 %v549
  %570 = vmatprep.subr.mxu0 0.0
  %571 = vmatpush1.msra.mxu0 0.0
  %572 = vmatprep.subr.mxu0 0.0
  %573 = vmatpush1.msra.mxu0 0.0
  %574 = vmatprep.subr.mxu0 0.0
  %575 = vmatpush1.msra.mxu0 0.0
  %576 = vmatprep.subr.mxu0 0.0
  %577 = vmatpush1.msra.mxu0 0.0
  %578 = vmatprep.subr.mxu0 0.0
  %579 = vmatpush1.msra.mxu0 0.0
  %580 = vmatprep.subr.mxu0 0.0
  %581 = vmatpush1.msra.mxu0 0.0
  %582 = vmatprep.subr.mxu0 0.0
  %583 = vmatpush1.msra.mxu0 0.0
  %584 = vmatprep.subr.mxu0 0.0
  %585 = vmatpush1.msra.mxu0 0.0
  %586 = vmatprep.subr.mxu0 0.0
  %587 = vmatpush1.msra.mxu0 0.0
  %588 = vmatprep.subr.mxu0 0.0
  %589 = vmatpush1.msra.mxu0 0.0
  %590 = vmatprep.subr.mxu0 0.0
  %591 = vmatpush1.msra.mxu0 0.0
  %592 = vmatprep.subr.mxu0 0.0
  %593 = vmatpush1.msra.mxu0 0.0
  %594 = vmatprep.subr.mxu0 0.0
  %595 = vmatpush1.msra.mxu0 0.0
  %596 = vmatprep.subr.mxu0 0.0
  %597 = vmatpush1.msra.mxu0 0.0
  %598 = vmatprep.subr.mxu0 0.0
  %599 = vmatpush1.msra.mxu0 0.0
  %600 = vmatprep.subr.mxu0 0.0
  %601 = vmatpush1.msra.mxu0 0.0
  %602 = vmatprep.subr.mxu0 0.0
  %603 = vmatpush1.msra.mxu0 0.0
  %604 = vmatprep.subr.mxu0 0.0
  %605 = vmatpush1.msra.mxu0 0.0
  %606 = vmatprep.subr.mxu0 0.0
  %607 = vmatpush1.msra.mxu0 0.0
  %608 = vmatprep.subr.mxu0 0.0
  %609 = vmatpush1.msra.mxu0 0.0
  %610 = vmatprep.subr.mxu0 0.0
  %611 = vmatpush1.msra.mxu0 0.0
  %612 = vmatprep.subr.mxu0 0.0
  %613 = vmatpush1.msra.mxu0 0.0
  %614 = vmatprep.subr.mxu0 0.0
  %615 = vmatpush1.msra.mxu0 0.0
  %616 = vmatprep.subr.mxu0 0.0
  %617 = vmatpush1.msra.mxu0 0.0
  %618 = vmatprep.subr.mxu0 0.0
  %619 = vmatpush1.msra.mxu0 0.0
  %620 = vmatprep.subr.mxu0 0.0
  %621 = vmatpush1.msra.mxu0 0.0
  %622 = vmatprep.subr.mxu0 0.0
  %623 = vmatpush1.msra.mxu0 0.0
  %624 = vmatprep.subr.mxu0 0.0
  %625 = vmatpush1.msra.mxu0 0.0
  %626 = vmatprep.mubr.f32.mxu0 0.0
  %627 = vmatmul.mubr.f32.gmra.mrb[0].mxu0 %v249
  %v628 = vpop.f32.mrb[0].mxu0
  %v629 = vadd.f32 %v555, %v628
  %v630 = vpop.f32.mrb[0].mxu0
  %631 = vmatprep.mubr.f32.mxu0 0.0
  %632 = vmatmul.mubr.f32.gmra.mrb[0].mxu0 %v349
  %v633 = vpop.f32.mrb[0].mxu0
  %v634 = vadd.f32 %v555, %v633
  %v635 = vpop.f32.mrb[0].mxu0
  %636 = vmatprep.mubr.f32.mxu0 0.0
  %637 = vmatmul.mubr.f32.gmra.mrb[0].mxu0 %v449
  %v638 = vpop.f32.mrb[0].mxu0
  %v639 = vadd.f32 %v555, %v638
  %v640 = vpop.f32.mrb[0].mxu0
  %641 = vmatprep.mubr.f32.mxu0 0.0
  %642 = vmatmul.mubr.f32.gmra.mrb[0].mxu0 %v560
  %v643 = vpop.f32.mrb[0].mxu0
  %v644 = vadd.f32 %v555, %v643
  %v645 = vpop.f32.mrb[0].mxu0
  %646 = vdwg.mxu0
  %v647 = vld [vmem:[%s5] sm:$0xff]
  %v648 = vld [vmem:[%s5 + $0x8] sm:$0xff]
  %v649 = vld [vmem:[%s5 + $0x10] sm:$0xff]
  %v650 = vld [vmem:[%s5 + $0x18] sm:$0xff]
  %651 = vmatprep.subr.mxu0 0.0
  %652 = vmatpush1.msra.mxu0 %v647
  %653 = vmatprep.subr.mxu0 0.0
  %654 = vmatpush1.msra.mxu0 %v648
  %655 = vmatprep.subr.mxu0 0.0
  %656 = vmatpush1.msra.mxu0 %v649
  %657 = vmatprep.subr.mxu0 0.0
  %658 = vmatpush1.msra.mxu0 %v650
  %659 = vmatprep.subr.mxu0 0.0
  %660 = vmatpush1.msra.mxu0 0.0
  %661 = vmatprep.subr.mxu0 0.0
  %662 = vmatpush1.msra.mxu0 0.0
  %663 = vmatprep.subr.mxu0 0.0
  %664 = vmatpush1.msra.mxu0 0.0
  %665 = vmatprep.subr.mxu0 0.0
  %666 = vmatpush1.msra.mxu0 0.0
  %667 = vmatprep.subr.mxu0 0.0
  %668 = vmatpush1.msra.mxu0 0.0
  %669 = vmatprep.subr.mxu0 0.0
  %670 = vmatpush1.msra.mxu0 0.0
  %671 = vmatprep.subr.mxu0 0.0
  %672 = vmatpush1.msra.mxu0 0.0
  %673 = vmatprep.subr.mxu0 0.0
  %674 = vmatpush1.msra.mxu0 0.0
  %675 = vmatprep.subr.mxu0 0.0
  %676 = vmatpush1.msra.mxu0 0.0
  %677 = vmatprep.subr.mxu0 0.0
  %678 = vmatpush1.msra.mxu0 0.0
  %679 = vmatprep.subr.mxu0 0.0
  %680 = vmatpush1.msra.mxu0 0.0
  %681 = vmatprep.subr.mxu0 0.0
  %682 = vmatpush1.msra.mxu0 0.0
  %683 = vmatprep.subr.mxu0 0.0
  %684 = vmatpush1.msra.mxu0 0.0
  %685 = vmatprep.subr.mxu0 0.0
  %686 = vmatpush1.msra.mxu0 0.0
  %687 = vmatprep.subr.mxu0 0.0
  %688 = vmatpush1.msra.mxu0 0.0
  %689 = vmatprep.subr.mxu0 0.0
  %690 = vmatpush1.msra.mxu0 0.0
  %691 = vmatprep.subr.mxu0 0.0
  %692 = vmatpush1.msra.mxu0 0.0
  %693 = vmatprep.subr.mxu0 0.0
  %694 = vmatpush1.msra.mxu0 0.0
  %695 = vmatprep.subr.mxu0 0.0
  %696 = vmatpush1.msra.mxu0 0.0
  %697 = vmatprep.subr.mxu0 0.0
  %698 = vmatpush1.msra.mxu0 0.0
  %699 = vmatprep.subr.mxu0 0.0
  %700 = vmatpush1.msra.mxu0 0.0
  %701 = vmatprep.subr.mxu0 0.0
  %702 = vmatpush1.msra.mxu0 0.0
  %703 = vmatprep.subr.mxu0 0.0
  %704 = vmatpush1.msra.mxu0 0.0
  %705 = vmatprep.subr.mxu0 0.0
  %706 = vmatpush1.msra.mxu0 0.0
  %707 = vmatprep.subr.mxu0 0.0
  %708 = vmatpush1.msra.mxu0 0.0
  %709 = vmatprep.subr.mxu0 0.0
  %710 = vmatpush1.msra.mxu0 0.0
  %711 = vmatprep.subr.mxu0 0.0
  %712 = vmatpush1.msra.mxu0 0.0
  %713 = vmatprep.subr.mxu0 0.0
  %714 = vmatpush1.msra.mxu0 0.0
  %715 = vmatprep.mubr.f32.mxu0 0.0
  %716 = vmatmul.mubr.f32.gmra.mrb[0].mxu0 %v149
  %v717 = vpop.f32.mrb[0].mxu0
  %v718 = vadd.f32 0.0, %v717
  %v719 = vpop.f32.mrb[0].mxu0
  %720 = vdwg.mxu0
  %v721 = vadd.f32 %v629, %v718
  %v722 = vxor.u32 %v721, 2147483648
  %v723 = vmul.f32 %v722, 1.442695
  %v724 = vpow.pop %v723
  %v725 = vadd.f32 %v724, 1.0
  %v726 = vrcp.pop %v725
  %v727 = vmul.f32 1.0, %v726
  %v728 = vtanh.pop %v721
  %v729 = vmul.f32 %v727, 0.0
  %731 = vrot.lane.b32.xlu0 %v728, 64
  %v732 = vpop.permute.xlu0 %731
  %v734 = vmul.f32 %v727, %v732
  %736 = vrot.lane.b32.xlu0 %v734, 32
  %v737 = vpop.permute.xlu0 %736
  %v739 = vadd.f32 %v729, %v737
  %v740 = vtanh.pop %v739
  %742 = vrot.lane.b32.xlu0 %v740, 64
  %v743 = vpop.permute.xlu0 %742
  %v745 = vmul.f32 %v727, %v743
  %747 = vrot.lane.b32.xlu0 %v745, 32
  %v748 = vpop.permute.xlu0 %747
  %v749 = vsel %vm147, %v748, 0
  %751 = vmatprep.subr.mxu0 0.0
  %752 = vmatpush1.msra.mxu0 %v647
  %753 = vmatprep.subr.mxu0 0.0
  %754 = vmatpush1.msra.mxu0 %v648
  %755 = vmatprep.subr.mxu0 0.0
  %756 = vmatpush1.msra.mxu0 %v649
  %757 = vmatprep.subr.mxu0 0.0
  %758 = vmatpush1.msra.mxu0 %v650
  %759 = vmatprep.subr.mxu0 0.0
  %760 = vmatpush1.msra.mxu0 0.0
  %761 = vmatprep.subr.mxu0 0.0
  %762 = vmatpush1.msra.mxu0 0.0
  %763 = vmatprep.subr.mxu0 0.0
  %764 = vmatpush1.msra.mxu0 0.0
  %765 = vmatprep.subr.mxu0 0.0
  %766 = vmatpush1.msra.mxu0 0.0
  %767 = vmatprep.subr.mxu0 0.0
  %768 = vmatpush1.msra.mxu0 0.0
  %769 = vmatprep.subr.mxu0 0.0
  %770 = vmatpush1.msra.mxu0 0.0
  %771 = vmatprep.subr.mxu0 0.0
  %772 = vmatpush1.msra.mxu0 0.0
  %773 = vmatprep.subr.mxu0 0.0
  %774 = vmatpush1.msra.mxu0 0.0
  %775 = vmatprep.subr.mxu0 0.0
  %776 = vmatpush1.msra.mxu0 0.0
  %777 = vmatprep.subr.mxu0 0.0
  %778 = vmatpush1.msra.mxu0 0.0
  %779 = vmatprep.subr.mxu0 0.0
  %780 = vmatpush1.msra.mxu0 0.0
  %781 = vmatprep.subr.mxu0 0.0
  %782 = vmatpush1.msra.mxu0 0.0
  %783 = vmatprep.subr.mxu0 0.0
  %784 = vmatpush1.msra.mxu0 0.0
  %785 = vmatprep.subr.mxu0 0.0
  %786 = vmatpush1.msra.mxu0 0.0
  %787 = vmatprep.subr.mxu0 0.0
  %788 = vmatpush1.msra.mxu0 0.0
  %789 = vmatprep.subr.mxu0 0.0
  %790 = vmatpush1.msra.mxu0 0.0
  %791 = vmatprep.subr.mxu0 0.0
  %792 = vmatpush1.msra.mxu0 0.0
  %793 = vmatprep.subr.mxu0 0.0
  %794 = vmatpush1.msra.mxu0 0.0
  %795 = vmatprep.subr.mxu0 0.0
  %796 = vmatpush1.msra.mxu0 0.0
  %797 = vmatprep.subr.mxu0 0.0
  %798 = vmatpush1.msra.mxu0 0.0
  %799 = vmatprep.subr.mxu0 0.0
  %800 = vmatpush1.msra.mxu0 0.0
  %801 = vmatprep.subr.mxu0 0.0
  %802 = vmatpush1.msra.mxu0 0.0
  %803 = vmatprep.subr.mxu0 0.0
  %804 = vmatpush1.msra.mxu0 0.0
  %805 = vmatprep.subr.mxu0 0.0
  %806 = vmatpush1.msra.mxu0 0.0
  %807 = vmatprep.subr.mxu0 0.0
  %808 = vmatpush1.msra.mxu0 0.0
  %809 = vmatprep.subr.mxu0 0.0
  %810 = vmatpush1.msra.mxu0 0.0
  %811 = vmatprep.subr.mxu0 0.0
  %812 = vmatpush1.msra.mxu0 0.0
  %813 = vmatprep.subr.mxu0 0.0
  %814 = vmatpush1.msra.mxu0 0.0
  %815 = vmatprep.mubr.f32.mxu0 0.0
  %816 = vmatmul.mubr.f32.gmra.mrb[0].mxu0 %v749
  %v817 = vpop.f32.mrb[0].mxu0
  %v818 = vadd.f32 0.0, %v817
  %v819 = vpop.f32.mrb[0].mxu0
  %820 = vdwg.mxu0
  %v821 = vadd.f32 %v634, %v818
  %v822 = vxor.u32 %v821, 2147483648
  %v823 = vmul.f32 %v822, 1.442695
  %v824 = vpow.pop %v823
  %v825 = vadd.f32 %v824, 1.0
  %v826 = vrcp.pop %v825
  %v827 = vmul.f32 1.0, %v826
  %v828 = vtanh.pop %v821
  %v829 = vmul.f32 %v827, %v739
  %831 = vrot.lane.b32.xlu0 %v828, 64
  %v832 = vpop.permute.xlu0 %831
  %v834 = vmul.f32 %v827, %v832
  %836 = vrot.lane.b32.xlu0 %v834, 32
  %v837 = vpop.permute.xlu0 %836
  %v839 = vadd.f32 %v829, %v837
  %v840 = vtanh.pop %v839
  %842 = vrot.lane.b32.xlu0 %v840, 64
  %v843 = vpop.permute.xlu0 %842
  %v845 = vmul.f32 %v827, %v843
  %847 = vrot.lane.b32.xlu0 %v845, 32
  %v848 = vpop.permute.xlu0 %847
  %v849 = vsel %vm147, %v848, 0
  %851 = vmatprep.subr.mxu0 0.0
  %852 = vmatpush1.msra.mxu0 %v647
  %853 = vmatprep.subr.mxu0 0.0
  %854 = vmatpush1.msra.mxu0 %v648
  %855 = vmatprep.subr.mxu0 0.0
  %856 = vmatpush1.msra.mxu0 %v649
  %857 = vmatprep.subr.mxu0 0.0
  %858 = vmatpush1.msra.mxu0 %v650
  %859 = vmatprep.subr.mxu0 0.0
  %860 = vmatpush1.msra.mxu0 0.0
  %861 = vmatprep.subr.mxu0 0.0
  %862 = vmatpush1.msra.mxu0 0.0
  %863 = vmatprep.subr.mxu0 0.0
  %864 = vmatpush1.msra.mxu0 0.0
  %865 = vmatprep.subr.mxu0 0.0
  %866 = vmatpush1.msra.mxu0 0.0
  %867 = vmatprep.subr.mxu0 0.0
  %868 = vmatpush1.msra.mxu0 0.0
  %869 = vmatprep.subr.mxu0 0.0
  %870 = vmatpush1.msra.mxu0 0.0
  %871 = vmatprep.subr.mxu0 0.0
  %872 = vmatpush1.msra.mxu0 0.0
  %873 = vmatprep.subr.mxu0 0.0
  %874 = vmatpush1.msra.mxu0 0.0
  %875 = vmatprep.subr.mxu0 0.0
  %876 = vmatpush1.msra.mxu0 0.0
  %877 = vmatprep.subr.mxu0 0.0
  %878 = vmatpush1.msra.mxu0 0.0
  %879 = vmatprep.subr.mxu0 0.0
  %880 = vmatpush1.msra.mxu0 0.0
  %881 = vmatprep.subr.mxu0 0.0
  %882 = vmatpush1.msra.mxu0 0.0
  %883 = vmatprep.subr.mxu0 0.0
  %884 = vmatpush1.msra.mxu0 0.0
  %885 = vmatprep.subr.mxu0 0.0
  %886 = vmatpush1.msra.mxu0 0.0
  %887 = vmatprep.subr.mxu0 0.0
  %888 = vmatpush1.msra.mxu0 0.0
  %889 = vmatprep.subr.mxu0 0.0
  %890 = vmatpush1.msra.mxu0 0.0
  %891 = vmatprep.subr.mxu0 0.0
  %892 = vmatpush1.msra.mxu0 0.0
  %893 = vmatprep.subr.mxu0 0.0
  %894 = vmatpush1.msra.mxu0 0.0
  %895 = vmatprep.subr.mxu0 0.0
  %896 = vmatpush1.msra.mxu0 0.0
  %897 = vmatprep.subr.mxu0 0.0
  %898 = vmatpush1.msra.mxu0 0.0
  %899 = vmatprep.subr.mxu0 0.0
  %900 = vmatpush1.msra.mxu0 0.0
  %901 = vmatprep.subr.mxu0 0.0
  %902 = vmatpush1.msra.mxu0 0.0
  %903 = vmatprep.subr.mxu0 0.0
  %904 = vmatpush1.msra.mxu0 0.0
  %905 = vmatprep.subr.mxu0 0.0
  %906 = vmatpush1.msra.mxu0 0.0
  %907 = vmatprep.subr.mxu0 0.0
  %908 = vmatpush1.msra.mxu0 0.0
  %909 = vmatprep.subr.mxu0 0.0
  %910 = vmatpush1.msra.mxu0 0.0
  %911 = vmatprep.subr.mxu0 0.0
  %912 = vmatpush1.msra.mxu0 0.0
  %913 = vmatprep.subr.mxu0 0.0
  %914 = vmatpush1.msra.mxu0 0.0
  %915 = vmatprep.mubr.f32.mxu0 0.0
  %916 = vmatmul.mubr.f32.gmra.mrb[0].mxu0 %v849
  %v917 = vpop.f32.mrb[0].mxu0
  %v918 = vadd.f32 0.0, %v917
  %v919 = vpop.f32.mrb[0].mxu0
  %920 = vdwg.mxu0
  %v921 = vadd.f32 %v639, %v918
  %v922 = vxor.u32 %v921, 2147483648
  %v923 = vmul.f32 %v922, 1.442695
  %v924 = vpow.pop %v923
  %v925 = vadd.f32 %v924, 1.0
  %v926 = vrcp.pop %v925
  %v927 = vmul.f32 1.0, %v926
  %v928 = vtanh.pop %v921
  %v929 = vmul.f32 %v927, %v839
  %931 = vrot.lane.b32.xlu0 %v928, 64
  %v932 = vpop.permute.xlu0 %931
  %v934 = vmul.f32 %v927, %v932
  %936 = vrot.lane.b32.xlu0 %v934, 32
  %v937 = vpop.permute.xlu0 %936
  %v939 = vadd.f32 %v929, %v937
  %v940 = vtanh.pop %v939
  %942 = vrot.lane.b32.xlu0 %v940, 64
  %v943 = vpop.permute.xlu0 %942
  %v945 = vmul.f32 %v927, %v943
  %947 = vrot.lane.b32.xlu0 %v945, 32
  %v948 = vpop.permute.xlu0 %947
  %v949 = vsel %vm147, %v948, 0
  %951 = vmatprep.subr.mxu0 0.0
  %952 = vmatpush1.msra.mxu0 %v647
  %953 = vmatprep.subr.mxu0 0.0
  %954 = vmatpush1.msra.mxu0 %v648
  %955 = vmatprep.subr.mxu0 0.0
  %956 = vmatpush1.msra.mxu0 %v649
  %957 = vmatprep.subr.mxu0 0.0
  %958 = vmatpush1.msra.mxu0 %v650
  %959 = vmatprep.subr.mxu0 0.0
  %960 = vmatpush1.msra.mxu0 0.0
  %961 = vmatprep.subr.mxu0 0.0
  %962 = vmatpush1.msra.mxu0 0.0
  %963 = vmatprep.subr.mxu0 0.0
  %964 = vmatpush1.msra.mxu0 0.0
  %965 = vmatprep.subr.mxu0 0.0
  %966 = vmatpush1.msra.mxu0 0.0
  %967 = vmatprep.subr.mxu0 0.0
  %968 = vmatpush1.msra.mxu0 0.0
  %969 = vmatprep.subr.mxu0 0.0
  %970 = vmatpush1.msra.mxu0 0.0
  %971 = vmatprep.subr.mxu0 0.0
  %972 = vmatpush1.msra.mxu0 0.0
  %973 = vmatprep.subr.mxu0 0.0
  %974 = vmatpush1.msra.mxu0 0.0
  %975 = vmatprep.subr.mxu0 0.0
  %976 = vmatpush1.msra.mxu0 0.0
  %977 = vmatprep.subr.mxu0 0.0
  %978 = vmatpush1.msra.mxu0 0.0
  %979 = vmatprep.subr.mxu0 0.0
  %980 = vmatpush1.msra.mxu0 0.0
  %981 = vmatprep.subr.mxu0 0.0
  %982 = vmatpush1.msra.mxu0 0.0
  %983 = vmatprep.subr.mxu0 0.0
  %984 = vmatpush1.msra.mxu0 0.0
  %985 = vmatprep.subr.mxu0 0.0
  %986 = vmatpush1.msra.mxu0 0.0
  %987 = vmatprep.subr.mxu0 0.0
  %988 = vmatpush1.msra.mxu0 0.0
  %989 = vmatprep.subr.mxu0 0.0
  %990 = vmatpush1.msra.mxu0 0.0
  %991 = vmatprep.subr.mxu0 0.0
  %992 = vmatpush1.msra.mxu0 0.0
  %993 = vmatprep.subr.mxu0 0.0
  %994 = vmatpush1.msra.mxu0 0.0
  %995 = vmatprep.subr.mxu0 0.0
  %996 = vmatpush1.msra.mxu0 0.0
  %997 = vmatprep.subr.mxu0 0.0
  %998 = vmatpush1.msra.mxu0 0.0
  %999 = vmatprep.subr.mxu0 0.0
  %1000 = vmatpush1.msra.mxu0 0.0
  %1001 = vmatprep.subr.mxu0 0.0
  %1002 = vmatpush1.msra.mxu0 0.0
  %1003 = vmatprep.subr.mxu0 0.0
  %1004 = vmatpush1.msra.mxu0 0.0
  %1005 = vmatprep.subr.mxu0 0.0
  %1006 = vmatpush1.msra.mxu0 0.0
  %1007 = vmatprep.subr.mxu0 0.0
  %1008 = vmatpush1.msra.mxu0 0.0
  %1009 = vmatprep.subr.mxu0 0.0
  %1010 = vmatpush1.msra.mxu0 0.0
  %1011 = vmatprep.subr.mxu0 0.0
  %1012 = vmatpush1.msra.mxu0 0.0
  %1013 = vmatprep.subr.mxu0 0.0
  %1014 = vmatpush1.msra.mxu0 0.0
  %1015 = vmatprep.mubr.f32.mxu0 0.0
  %1016 = vmatmul.mubr.f32.gmra.mrb[0].mxu0 %v949
  %v1017 = vpop.f32.mrb[0].mxu0
  %v1018 = vadd.f32 0.0, %v1017
  %v1019 = vpop.f32.mrb[0].mxu0
  %1020 = vdwg.mxu0
  %v1021 = vadd.f32 %v644, %v1018
  %v1022 = vxor.u32 %v1021, 2147483648
  %v1023 = vmul.f32 %v1022, 1.442695
  %v1024 = vpow.pop %v1023
  %v1025 = vadd.f32 %v1024, 1.0
  %v1026 = vrcp.pop %v1025
  %v1027 = vmul.f32 1.0, %v1026
  %v1028 = vtanh.pop %v1021
  %v1029 = vmul.f32 %v1027, %v939
  %1031 = vrot.lane.b32.xlu0 %v1028, 64
  %v1032 = vpop.permute.xlu0 %1031
  %v1034 = vmul.f32 %v1027, %v1032
  %1036 = vrot.lane.b32.xlu0 %v1034, 32
  %v1037 = vpop.permute.xlu0 %1036
  %v1039 = vadd.f32 %v1029, %v1037
  %v1040 = vtanh.pop %v1039
  %1042 = vrot.lane.b32.xlu0 %v1040, 64
  %v1043 = vpop.permute.xlu0 %1042
  %v1045 = vmul.f32 %v1027, %v1043
  %v1046 = vld [vmem:[%s7] sm:$0xff]
  %v1047 = vld [vmem:[%s7 + $0x8] sm:$0xff]
  %v1048 = vld [vmem:[%s7 + $0x10] sm:$0xff]
  %v1049 = vld [vmem:[%s7 + $0x18] sm:$0xff]
  %v1050 = vld [vmem:[%s8] sm:$0x1]
  %v1052 = vlaneseq
  %v1053 = vshrl.u32 %v1052, 7
  %v1054 = vsub.s32 0, %v1053
  %v1055 = vrot.slane %v1050, %v1054
  %1058 = vrot.lane.b32.xlu0 %v1045, 32
  %v1059 = vpop.permute.xlu0 %1058
  %v1060 = vsel %vm147, %v1059, 0
  %1062 = vmatprep.subr.mxu0 0.0
  %1063 = vmatpush1.msra.mxu0 %v1046
  %1064 = vmatprep.subr.mxu0 0.0
  %1065 = vmatpush1.msra.mxu0 %v1047
  %1066 = vmatprep.subr.mxu0 0.0
  %1067 = vmatpush1.msra.mxu0 %v1048
  %1068 = vmatprep.subr.mxu0 0.0
  %1069 = vmatpush1.msra.mxu0 %v1049
  %1070 = vmatprep.subr.mxu0 0.0
  %1071 = vmatpush1.msra.mxu0 0.0
  %1072 = vmatprep.subr.mxu0 0.0
  %1073 = vmatpush1.msra.mxu0 0.0
  %1074 = vmatprep.subr.mxu0 0.0
  %1075 = vmatpush1.msra.mxu0 0.0
  %1076 = vmatprep.subr.mxu0 0.0
  %1077 = vmatpush1.msra.mxu0 0.0
  %1078 = vmatprep.subr.mxu0 0.0
  %1079 = vmatpush1.msra.mxu0 0.0
  %1080 = vmatprep.subr.mxu0 0.0
  %1081 = vmatpush1.msra.mxu0 0.0
  %1082 = vmatprep.subr.mxu0 0.0
  %1083 = vmatpush1.msra.mxu0 0.0
  %1084 = vmatprep.subr.mxu0 0.0
  %1085 = vmatpush1.msra.mxu0 0.0
  %1086 = vmatprep.subr.mxu0 0.0
  %1087 = vmatpush1.msra.mxu0 0.0
  %1088 = vmatprep.subr.mxu0 0.0
  %1089 = vmatpush1.msra.mxu0 0.0
  %1090 = vmatprep.subr.mxu0 0.0
  %1091 = vmatpush1.msra.mxu0 0.0
  %1092 = vmatprep.subr.mxu0 0.0
  %1093 = vmatpush1.msra.mxu0 0.0
  %1094 = vmatprep.subr.mxu0 0.0
  %1095 = vmatpush1.msra.mxu0 0.0
  %1096 = vmatprep.subr.mxu0 0.0
  %1097 = vmatpush1.msra.mxu0 0.0
  %1098 = vmatprep.subr.mxu0 0.0
  %1099 = vmatpush1.msra.mxu0 0.0
  %1100 = vmatprep.subr.mxu0 0.0
  %1101 = vmatpush1.msra.mxu0 0.0
  %1102 = vmatprep.subr.mxu0 0.0
  %1103 = vmatpush1.msra.mxu0 0.0
  %1104 = vmatprep.subr.mxu0 0.0
  %1105 = vmatpush1.msra.mxu0 0.0
  %1106 = vmatprep.subr.mxu0 0.0
  %1107 = vmatpush1.msra.mxu0 0.0
  %1108 = vmatprep.subr.mxu0 0.0
  %1109 = vmatpush1.msra.mxu0 0.0
  %1110 = vmatprep.subr.mxu0 0.0
  %1111 = vmatpush1.msra.mxu0 0.0
  %1112 = vmatprep.subr.mxu0 0.0
  %1113 = vmatpush1.msra.mxu0 0.0
  %1114 = vmatprep.subr.mxu0 0.0
  %1115 = vmatpush1.msra.mxu0 0.0
  %1116 = vmatprep.subr.mxu0 0.0
  %1117 = vmatpush1.msra.mxu0 0.0
  %1118 = vmatprep.subr.mxu0 0.0
  %1119 = vmatpush1.msra.mxu0 0.0
  %1120 = vmatprep.subr.mxu0 0.0
  %1121 = vmatpush1.msra.mxu0 0.0
  %1122 = vmatprep.subr.mxu0 0.0
  %1123 = vmatpush1.msra.mxu0 0.0
  %1124 = vmatprep.subr.mxu0 0.0
  %1125 = vmatpush1.msra.mxu0 0.0
  %1126 = vmatprep.mubr.f32.mxu0 0.0
  %1127 = vmatmul.mubr.f32.gmra.mrb[0].mxu0 %v749
  %v1128 = vpop.f32.mrb[0].mxu0
  %v1129 = vadd.f32 %v1055, %v1128
  %v1130 = vpop.f32.mrb[0].mxu0
  %1131 = vmatprep.mubr.f32.mxu0 0.0
  %1132 = vmatmul.mubr.f32.gmra.mrb[0].mxu0 %v849
  %v1133 = vpop.f32.mrb[0].mxu0
  %v1134 = vadd.f32 %v1055, %v1133
  %v1135 = vpop.f32.mrb[0].mxu0
  %1136 = vmatprep.mubr.f32.mxu0 0.0
  %1137 = vmatmul.mubr.f32.gmra.mrb[0].mxu0 %v949
  %v1138 = vpop.f32.mrb[0].mxu0
  %v1139 = vadd.f32 %v1055, %v1138
  %v1140 = vpop.f32.mrb[0].mxu0
  %1141 = vmatprep.mubr.f32.mxu0 0.0
  %1142 = vmatmul.mubr.f32.gmra.mrb[0].mxu0 %v1060
  %v1143 = vpop.f32.mrb[0].mxu0
  %v1144 = vadd.f32 %v1055, %v1143
  %v1145 = vpop.f32.mrb[0].mxu0
  %1146 = vdwg.mxu0
  %vm1147 = vcmask 523264
  %v1148 = vsel %vm1147, %v1129, -inf
  %1149 = vmax.xlane.f32.xlu0 %v1148
  %v1150 = vpop.xlane.xlu0 %1149
  %v1151 = vsel %vm1147, %v1134, -inf
  %1152 = vmax.xlane.f32.xlu0 %v1151
  %v1153 = vpop.xlane.xlu0 %1152
  %v1154 = vsel %vm1147, %v1139, -inf
  %1155 = vmax.xlane.f32.xlu0 %v1154
  %v1156 = vpop.xlane.xlu0 %1155
  %v1157 = vsel %vm1147, %v1144, -inf
  %1158 = vmax.xlane.f32.xlu0 %v1157
  %v1159 = vpop.xlane.xlu0 %1158
  %v1160 = vsub.f32 %v1129, %v1150
  %v1161 = vsub.f32 %v1134, %v1153
  %v1162 = vsub.f32 %v1139, %v1156
  %v1163 = vsub.f32 %v1144, %v1159
  %v1164 = vmul.f32 %v1160, 1.442695
  %v1165 = vpow.pop %v1164
  %v1166 = vmul.f32 %v1161, 1.442695
  %v1167 = vpow.pop %v1166
  %v1168 = vmul.f32 %v1162, 1.442695
  %v1169 = vpow.pop %v1168
  %v1170 = vmul.f32 %v1163, 1.442695
  %v1171 = vpow.pop %v1170
  %v1172 = vsel %vm1147, %v1165, 0.0
  %1173 = vadd.xlane.f32.xlu0 %v1172
  %v1174 = vpop.xlane.xlu0 %1173
  %v1175 = vsel %vm1147, %v1167, 0.0
  %1176 = vadd.xlane.f32.xlu0 %v1175
  %v1177 = vpop.xlane.xlu0 %1176
  %v1178 = vsel %vm1147, %v1169, 0.0
  %1179 = vadd.xlane.f32.xlu0 %v1178
  %v1180 = vpop.xlane.xlu0 %1179
  %v1181 = vsel %vm1147, %v1171, 0.0
  %1182 = vadd.xlane.f32.xlu0 %v1181
  %v1183 = vpop.xlane.xlu0 %1182
  %v1184 = vlog2.pop %v1174
  %v1185 = vmul.f32 %v1184, 0.6931472
  %v1186 = vlog2.pop %v1177
  %v1187 = vmul.f32 %v1186, 0.6931472
  %v1188 = vlog2.pop %v1180
  %v1189 = vmul.f32 %v1188, 0.6931472
  %v1190 = vlog2.pop %v1183
  %v1191 = vmul.f32 %v1190, 0.6931472
  %v1192 = vadd.f32 %v1150, %v1185
  %v1193 = vadd.f32 %v1153, %v1187
  %v1194 = vadd.f32 %v1156, %v1189
  %v1195 = vadd.f32 %v1159, %v1191
  %v1196 = vsub.f32 %v1129, %v1192
  %v1197 = vsub.f32 %v1134, %v1193
  %v1198 = vsub.f32 %v1139, %v1194
  %v1199 = vsub.f32 %v1144, %v1195
  %1200 = vst.msk [vmem:[%s9] sm:$0xff] %vm1147, %v1196
  %1201 = vst.msk [vmem:[%s9 + $0x8] sm:$0xff] %vm1147, %v1197
  %1202 = vst.msk [vmem:[%s9 + $0x10] sm:$0xff] %vm1147, %v1198
  %1203 = vst.msk [vmem:[%s9 + $0x18] sm:$0xff] %vm1147, %v1199
  // Predicated region
  $region38: #{model_forward.1} parent=0 // pred_check
    _
  $region39: #{model_forward.1} parent=0 // pred_check_branch
    %1205 = sbr.rel (0) target = $region41
  $region40: #{model_forward.1} parent=0 // pred_region
    _
  $region41: #{model_forward.1} parent=0 // pred_fallthru
    _
  // Predicated region
  $region42: #{model_forward.1} parent=0 // pred_check
    _
  $region43: #{model_forward.1} parent=0 // pred_check_branch
    %1207 = sbr.rel (0) target = $region45
  $region44: #{model_forward.1} parent=0 // pred_region
    _
  $region45: #{model_forward.1} parent=0 // pred_fallthru
    _

</llo_original>
